<compile_context>
chip_gen: v5e
topology: v5e:2x2
jax: 0.10.0
libtpu: 0.0.40
codegen_flags: <defaults>
</compile_context>

<pallas_src>
import jax
import jax.numpy as jnp
import numpy as np
from jax.experimental import pallas as pl
from jax.experimental.pallas import tpu as pltpu

TILE_N = 4096   # batch rows (lanes) per grid step; (H, TILE_N) f32 intermediates
                # are 4 MiB at H=256, comfortably inside the 32 MiB scoped VMEM.


def _round_up(x, m):
    return (x + m - 1) // m * m


def _pick_tile_n(n, tile_n):
    # Keep >= 2 grid steps when the batch allows it (v7x has 2 TensorCores and
    # the batch axis is the only parallel axis), and keep the lane dim a
    # multiple of 128.
    tile_n = min(tile_n, _round_up(max(n // 2, 1), 128))
    return max(tile_n, 128)


def pinn_forward_kernel(xt_ref, p_ref, w2_ref, b2_ref, o_ref):
    # xt_ref : (in, TILE_N)      input tile, transposed (features x batch-lanes)
    # p_ref  : (H, in+1)         packed [0.5*W1 | 0.5*b1]            (resident)
    # w2_ref : (8, H)            row 0 = 0.5*W2, rows 1..7 zero      (resident)
    # b2_ref : (1, 1)  [SMEM]    folded scalar bias  b2 + 0.5*sum(W2)
    # o_ref  : (1, 1, TILE_N)    lane-dense output block
    in_dim = xt_ref.shape[0]

    # Layer 1 (K=2): VPU broadcast-FMAs.  Sigmoid constants are pre-folded, so
    # this already yields h = 0.5*(W1 x + b1).
    h = p_ref[:, in_dim:in_dim + 1]                      # (H, 1) bias column
    for k in range(in_dim):                              # static trace-time unroll
        h = h + p_ref[:, k:k + 1] * xt_ref[k:k + 1, :]   # (H, TILE_N)

    t = jnp.tanh(h)                                      # single EUP op / element

    # Layer 2 (K=H): on the otherwise-idle MXU.  M is padded to the native
    # 8-sublane tile; only row 0 carries real data.
    acc = jnp.dot(w2_ref[...], t, preferred_element_type=jnp.float32)  # (8, TILE_N)
    out = acc[0:1, :] + b2_ref[0, 0]                     # (1, TILE_N)

    o_ref[...] = out.reshape(o_ref.shape).astype(o_ref.dtype)


def fold_pinn_params(w1, b1, w2, b2):
    """Fold sigmoid(z) = 0.5*(tanh(z/2)+1) into the weights and pack them.

    Must be re-run whenever w1/b1/w2/b2 change (i.e. every training step) —
    it is O(hidden) work on (256,2)/(256,1)-sized tensors, negligible.
    Returns (params (H, in+1), w2_pad (8, H), b2_fold (1, 1))."""
    hidden, _ = w1.shape
    params = jnp.concatenate([0.5 * w1, 0.5 * jnp.reshape(b1, (hidden, 1))], axis=1)
    w2_row = 0.5 * jnp.reshape(w2, (1, hidden))
    w2_pad = jnp.concatenate(
        [w2_row, jnp.zeros((7, hidden), w2_row.dtype)], axis=0)       # (8, H)
    b2_fold = jnp.reshape(jnp.reshape(b2, ()) + 0.5 * jnp.sum(w2), (1, 1))
    return params, w2_pad, b2_fold


def prepare_collocation(x, *, tile_n=TILE_N):
    """Layout plumbing for the collocation points: pad the batch to a multiple
    of the tile and transpose to (features, batch-lanes).  PINN training reuses
    the same x every step — cache this result instead of redoing it per call."""
    n, _ = x.shape
    tile_n = _pick_tile_n(n, tile_n)
    n_tiles = pl.cdiv(n, tile_n)
    n_pad = n_tiles * tile_n
    x_t = jnp.pad(x, ((0, n_pad - n), (0, 0))).T          # (in, n_pad)
    return x_t, n, tile_n


def pinn_forward_prepared(x_t, params, w2_pad, b2_fold, n, tile_n):
    """Forward pass given already-folded weights and already-transposed inputs."""
    in_dim, n_pad = x_t.shape
    hidden = params.shape[0]
    n_tiles = n_pad // tile_n

    out = pl.pallas_call(
        pinn_forward_kernel,
        out_shape=jax.ShapeDtypeStruct((n_tiles, 1, tile_n), x_t.dtype),
        grid=(n_tiles,),
        in_specs=[
            pl.BlockSpec((in_dim, tile_n), lambda i: (0, i)),           # x tile
            pl.BlockSpec((hidden, in_dim + 1), lambda i: (0, 0)),       # [W1|b1] (resident)
            pl.BlockSpec((8, hidden), lambda i: (0, 0)),                # W2 row (resident)
            pl.BlockSpec(memory_space=pltpu.MemorySpace.SMEM),          # folded b2 scalar
        ],
        out_specs=pl.BlockSpec((1, 1, tile_n), lambda i: (i, 0, 0)),
        compiler_params=pltpu.CompilerParams(
            dimension_semantics=("parallel",),
            vmem_limit_bytes=32 * 1024 * 1024),
    )(x_t, params, w2_pad, b2_fold)

    return out.reshape(n_pad, 1)[:n]


def pinn_forward(x, w1, b1, w2, b2, *, tile_n=TILE_N):
    """One-shot forward (fold + layout + kernel).

    x: (N, in)   w1: (hidden, in)   b1: (hidden,)   w2: (1, hidden)   b2: (1,)
    Returns (N, 1).  Training loops should call fold_pinn_params (per weight
    update) and prepare_collocation (once) and use pinn_forward_prepared."""
    params, w2_pad, b2_fold = fold_pinn_params(w1, b1, w2, b2)
    x_t, n, tile_n = prepare_collocation(x, tile_n=tile_n)
    return pinn_forward_prepared(x_t, params, w2_pad, b2_fold, n, tile_n)


def init_params(key, input_node=2, hidden_node=256, output_node=1):
    """PyTorch nn.Linear default init (U[-1/sqrt(fan_in), +1/sqrt(fan_in)]),
    weights kept in PyTorch (out_features, in_features) layout."""
    k1, k2, k3, k4, k5 = jax.random.split(key, 5)
    bound1 = 1.0 / np.sqrt(input_node)
    bound2 = 1.0 / np.sqrt(hidden_node)
    w1 = jax.random.uniform(k1, (hidden_node, input_node), jnp.float32, -bound1, bound1)
    b1 = jax.random.uniform(k2, (hidden_node,), jnp.float32, -bound1, bound1)
    w2 = jax.random.uniform(k3, (output_node, hidden_node), jnp.float32, -bound2, bound2)
    b2 = jax.random.uniform(k4, (output_node,), jnp.float32, -bound2, bound2)
    # Scalar physics parameters (T_dotr, K_delta, N_r, ...) — used only by
    # pinn_loss, never by forward().
    phys = jax.random.normal(k5, (13,), jnp.float32)
    return w1, b1, w2, b2, phys


if __name__ == "__main__":
    key = jax.random.PRNGKey(0)
    kx, kp = jax.random.split(key)

    # Modest collocation batch: exercises padding (2000 -> 2048) and yields an
    # even 2-step grid (one step per v7x TensorCore).
    batch, input_node, hidden_node, output_node = 2000, 2, 256, 1
    x = jax.random.normal(kx, (batch, input_node), jnp.float32)
    w1, b1, w2, b2, _phys = init_params(kp, input_node, hidden_node, output_node)

    # Training-loop style usage: fold weights + prepare layout once, reuse.
    params, w2_pad, b2_fold = fold_pinn_params(w1, b1, w2, b2)
    x_t, n, tile_n = prepare_collocation(x)
    out = pinn_forward_prepared(x_t, params, w2_pad, b2_fold, n, tile_n)
    out = jax.block_until_ready(out)

    # Pure-JAX reference of the PyTorch forward (exact f32 matmuls).
    h_ref = jax.nn.sigmoid(
        jnp.dot(x, w1.T, precision=jax.lax.Precision.HIGHEST) + b1)
    ref = jnp.dot(h_ref, w2.T, precision=jax.lax.Precision.HIGHEST) + b2

    # Tolerance sized to admit MXU f32 (multi-pass) rounding on the layer-2 dot
    # vs. the HIGHEST-precision reference; any folding/algebra bug would be
    # orders of magnitude larger than this.
    np.testing.assert_allclose(np.asarray(out), np.asarray(ref), rtol=2e-3, atol=2e-3)

    assert out.shape == (batch, output_node)

    # Also sanity-check the convenience wrapper path.
    out2 = jax.block_until_ready(pinn_forward(x, w1, b1, w2, b2))
    np.testing.assert_allclose(np.asarray(out2), np.asarray(out), rtol=0, atol=0)

    print("KERNEL_OK")
</pallas_src>

<mosaic_0001>
module attributes {stable_mosaic.version = 11 : i64} {
  func.func @pinn_forward_kernel(%arg0: i32, %arg1: memref<2x1024xf32, #tpu.memory_space<vmem>>, %arg2: memref<256x3xf32, #tpu.memory_space<vmem>>, %arg3: memref<8x256xf32, #tpu.memory_space<vmem>>, %arg4: memref<1x1xf32, #tpu.memory_space<smem>>, %arg5: memref<1x1x1024xf32, #tpu.memory_space<vmem>>) attributes {dimension_semantics = [#tpu.dimension_semantics<parallel>], iteration_bounds = array<i64: 2>, scalar_prefetch = 0 : i64, scratch_operands = 0 : i64, tpu.core_type = #tpu.core_type<tc>, window_params = [{transform_indices = @transform_0, window_bounds = array<i64: 2, 1024>}, {pipeline_mode = #tpu.pipeline_mode<synchronous>, transform_indices = @transform_1, window_bounds = array<i64: 256, 3>}, {pipeline_mode = #tpu.pipeline_mode<synchronous>, transform_indices = @transform_2, window_bounds = array<i64: 8, 256>}, {transform_indices = @transform_3, window_bounds = array<i64: 1, 1>}, {transform_indices = @transform_4, window_bounds = array<i64: 1, 1, 1024>}]} {
    %c0 = arith.constant 0 : index
    %c2 = arith.constant 2 : index
    %0 = vector.load %arg2[%c0, %c2] : memref<256x3xf32, #tpu.memory_space<vmem>>, vector<256x1xf32>
    %c0_0 = arith.constant 0 : index
    %c0_1 = arith.constant 0 : index
    %1 = vector.load %arg2[%c0_0, %c0_1] : memref<256x3xf32, #tpu.memory_space<vmem>>, vector<256x1xf32>
    %c0_2 = arith.constant 0 : index
    %c0_3 = arith.constant 0 : index
    %2 = vector.load %arg1[%c0_2, %c0_3] : memref<2x1024xf32, #tpu.memory_space<vmem>>, vector<1x1024xf32>
    %3 = vector.broadcast %1 : vector<256x1xf32> to vector<256x1024xf32>
    %4 = vector.broadcast %2 : vector<1x1024xf32> to vector<256x1024xf32>
    %5 = arith.mulf %3, %4 : vector<256x1024xf32>
    %6 = vector.broadcast %0 : vector<256x1xf32> to vector<256x1024xf32>
    %7 = arith.addf %6, %5 : vector<256x1024xf32>
    %c0_4 = arith.constant 0 : index
    %c1 = arith.constant 1 : index
    %8 = vector.load %arg2[%c0_4, %c1] : memref<256x3xf32, #tpu.memory_space<vmem>>, vector<256x1xf32>
    %c1_5 = arith.constant 1 : index
    %c0_6 = arith.constant 0 : index
    %9 = vector.load %arg1[%c1_5, %c0_6] : memref<2x1024xf32, #tpu.memory_space<vmem>>, vector<1x1024xf32>
    %10 = vector.broadcast %8 : vector<256x1xf32> to vector<256x1024xf32>
    %11 = vector.broadcast %9 : vector<1x1024xf32> to vector<256x1024xf32>
    %12 = arith.mulf %10, %11 : vector<256x1024xf32>
    %13 = arith.addf %7, %12 : vector<256x1024xf32>
    %14 = math.tanh %13 : vector<256x1024xf32>
    %c0_7 = arith.constant 0 : index
    %c0_8 = arith.constant 0 : index
    %15 = vector.load %arg3[%c0_7, %c0_8] : memref<8x256xf32, #tpu.memory_space<vmem>>, vector<8x256xf32>
    %cst = arith.constant dense<0.000000e+00> : vector<8x1024xf32>
    %16 = tpu.matmul %15, %14, %cst {dimension_numbers = #tpu.dot_dimension_numbers<[1], [0], [0], [1], [0, 0, 1, 1], [], []>} : vector<8x256xf32>, vector<256x1024xf32>, vector<8x1024xf32> -> vector<8x1024xf32>
    %17 = vector.extract_strided_slice %16 {offsets = [0, 0], sizes = [1, 1024], strides = [1, 1]} : vector<8x1024xf32> to vector<1x1024xf32>
    %c0_9 = arith.constant 0 : index
    %c0_10 = arith.constant 0 : index
    %18 = memref.load %arg4[%c0_9, %c0_10] : memref<1x1xf32, #tpu.memory_space<smem>>
    %19 = vector.broadcast %18 : f32 to vector<1x1024xf32>
    %20 = arith.addf %17, %19 : vector<1x1024xf32>
    %21 = vector.shape_cast %20 : vector<1x1024xf32> to vector<1x1x1024xf32>
    %c0_11 = arith.constant 0 : index
    %c0_12 = arith.constant 0 : index
    %c0_13 = arith.constant 0 : index
    %22 = vector.load %arg5[%c0_11, %c0_12, %c0_13] : memref<1x1x1024xf32, #tpu.memory_space<vmem>>, vector<1x1x1024xf32>
    tpu.vector_store %arg5[%c0_11, %c0_12, %c0_13], %21 {strides = array<i32>} : memref<1x1x1024xf32, #tpu.memory_space<vmem>>, vector<1x1x1024xf32>,
    return
  }
  func.func @transform_0(%arg0: i32) -> (i32, i32) {
    %c0_i32 = arith.constant 0 : i32
    %c0_i32_0 = arith.constant 0 : i32
    return %c0_i32, %arg0 : i32, i32
  }
  func.func @transform_1(%arg0: i32) -> (i32, i32) {
    %c0_i32 = arith.constant 0 : i32
    %c0_i32_0 = arith.constant 0 : i32
    %c0_i32_1 = arith.constant 0 : i32
    return %c0_i32, %c0_i32_0 : i32, i32
  }
  func.func @transform_2(%arg0: i32) -> (i32, i32) {
    %c0_i32 = arith.constant 0 : i32
    %c0_i32_0 = arith.constant 0 : i32
    %c0_i32_1 = arith.constant 0 : i32
    return %c0_i32, %c0_i32_0 : i32, i32
  }
  func.func @transform_3(%arg0: i32) -> (i32, i32) {
    %c0_i32 = arith.constant 0 : i32
    %c0_i32_0 = arith.constant 0 : i32
    %c0_i32_1 = arith.constant 0 : i32
    return %c0_i32, %c0_i32_0 : i32, i32
  }
  func.func @transform_4(%arg0: i32) -> (i32, i32, i32) {
    %c0_i32 = arith.constant 0 : i32
    %c0_i32_0 = arith.constant 0 : i32
    %c0_i32_1 = arith.constant 0 : i32
    return %arg0, %c0_i32, %c0_i32_0 : i32, i32, i32
  }
}

</mosaic_0001>

<llo_original>
// kernel: tpu_custom_call.1
$region0: #{tpu_custom_call.1}
  #allocation0 [shape = 'u32[]', space=smem, size = 0x4, offset = 0x4, fixed_abs, tag = 'smem constant byte address 0x4 - core index']
  #allocation1 [shape = 'u32[72,128]{1,0:T(1,128)}', space=vmem, size = 0x9000, scoped, tag = 'internal scratch']
  #allocation2 [shape = 'f32[1,1]{1,0:T(1,128)S(6)}', space=smem, size = 0x200, scoped, tag = 'scoped memory for tpu_custom_call.1']
  %s0 = inlined_call_operand.vmem [shape: f32[2,2048], index: 0, kind: input, shape index: {}]
  %s1 = inlined_call_operand.vmem [shape: f32[256,3], index: 1, kind: input, shape index: {}]
  %s2 = inlined_call_operand.vmem [shape: f32[8,256], index: 2, kind: input, shape index: {}]
  %s3 = inlined_call_operand.<no memory space> [shape: f32[1,1], index: 3, kind: input, shape index: {}]
  %s4 = inlined_call_operand.hbm [shape: f32[2,1,1024], index: 4, kind: output, shape index: {}]
  %s5 = sld [smem:[#allocation0]]
  $region49: #{tpu_custom_call.1} parent=0
    _
  %s7 = ssub.s32 1, %s5
  %s8 = scalar_select 0, %s7, %s5
  %9 = sst [smem:[#allocation2]] %s3
  $region1: #{tpu_custom_call.1} parent=0
    #allocation3 [shape = 'u8[8192]{0}', space=vmem, size = 0x2000, scoped, tag = 'output window, operand 0']
    #allocation4 [shape = 's32[2]{0}', space=sflag, size = 0x8, scoped, tag = 'scoped memory for tpu_custom_call.1']
    %10 = vsyncpa [#allocation4], 0
    %s11 = scalar_lea.sflag [#allocation4], 1
    %12 = vsyncpa %s11, 0
    loop: start=0, step=1, limit=4
    $region2: #{tpu_custom_call.1} parent=1 // loop_pre_header
      _
    $region3: #{tpu_custom_call.1} parent=1 // loop_header
      %s14 = sphi 0, %s18
      %p15 = scmp.ge.s32.totalorder %s14, 4
      %s24 = sphi 0, %s26
      %s27 = sphi 0, %s24
      %s28 = sphi 0, %s27
      %s44 = sphi 0, %s28
      %s48 = sphi 0, %s48
      %s50 = sphi 0, %s48
      %s51 = sphi 0, %s50
      %s65 = sphi 0, %s51
      %s69 = sphi 0, %s69
      %s71 = sphi 0, %s69
      %s72 = sphi 0, %s71
      %s86 = sphi 0, %s72
      %s90 = sphi 0, %s90
      %s92 = sphi 0, %s90
      %s93 = sphi 0, %s92
      %s107 = sphi 0, %s93
      %s113 = sphi 0, %s115
      %s116 = sphi 0, %s113
      %s117 = sphi 0, %s116
      %s133 = sphi 0, %s117
    $region4: #{tpu_custom_call.1} parent=1 // loop_header_branch
      %17 = sbr.rel (%p15) target = $region8
    $region5: #{tpu_custom_call.1} parent=1 // loop_body
      %s19 = ssub.s32 %s14, 1
      %s20 = ssub.s32 %s14, 2
      %s21 = sadd.s32 %s14, 1
      %s22 = ssub.s32 %s14, %s21
      %p23 = scmp.eq.s32.totalorder %s22, 0
      %s25 = sadd.s32 %s24, 1
      %s26 = scalar_select %p23, %s24, %s25
      %p29 = pneg %p23
      %p30 = scmp.eq.s32.totalorder %s14, 1
      %p31 = por %p29, %p30
      %p32 = scmp.ne.s32.totalorder %s24, %s27
      %p33 = scmp.eq.s32.totalorder %s14, 0
      %p34 = por %p32, %p33
      %p35 = scmp.ne.s32.totalorder %s24, %s27
      %p36 = scmp.eq.s32.totalorder %s19, 1
      %p37 = por %p35, %p36
      %p38 = scmp.ne.s32.totalorder %s27, %s28
      %p39 = scmp.eq.s32.totalorder %s19, 0
      %p40 = por %p38, %p39
      %p41 = scmp.ne.s32.totalorder %s27, %s28
      %p42 = scmp.eq.s32.totalorder %s20, 1
      %p43 = por %p41, %p42
      %p45 = scmp.ne.s32.totalorder %s28, %s44
      %p46 = scmp.eq.s32.totalorder %s20, 0
      %p47 = por %p45, %p46
      %s49 = sadd.s32 %s48, 1
      %p52 = scmp.eq.s32.totalorder %s14, 1
      %p53 = scmp.ne.s32.totalorder %s48, %s50
      %p54 = scmp.eq.s32.totalorder %s14, 0
      %p55 = por %p53, %p54
      %p56 = scmp.ne.s32.totalorder %s48, %s50
      %p57 = scmp.eq.s32.totalorder %s19, 1
      %p58 = por %p56, %p57
      %p59 = scmp.ne.s32.totalorder %s50, %s51
      %p60 = scmp.eq.s32.totalorder %s19, 0
      %p61 = por %p59, %p60
      %p62 = scmp.ne.s32.totalorder %s50, %s51
      %p63 = scmp.eq.s32.totalorder %s20, 1
      %p64 = por %p62, %p63
      %p66 = scmp.ne.s32.totalorder %s51, %s65
      %p67 = scmp.eq.s32.totalorder %s20, 0
      %p68 = por %p66, %p67
      %s70 = sadd.s32 %s69, 1
      %p73 = scmp.eq.s32.totalorder %s14, 1
      %p74 = scmp.ne.s32.totalorder %s69, %s71
      %p75 = scmp.eq.s32.totalorder %s14, 0
      %p76 = por %p74, %p75
      %p77 = scmp.ne.s32.totalorder %s69, %s71
      %p78 = scmp.eq.s32.totalorder %s19, 1
      %p79 = por %p77, %p78
      %p80 = scmp.ne.s32.totalorder %s71, %s72
      %p81 = scmp.eq.s32.totalorder %s19, 0
      %p82 = por %p80, %p81
      %p83 = scmp.ne.s32.totalorder %s71, %s72
      %p84 = scmp.eq.s32.totalorder %s20, 1
      %p85 = por %p83, %p84
      %p87 = scmp.ne.s32.totalorder %s72, %s86
      %p88 = scmp.eq.s32.totalorder %s20, 0
      %p89 = por %p87, %p88
      %s91 = sadd.s32 %s90, 1
      %p94 = scmp.eq.s32.totalorder %s14, 1
      %p95 = scmp.ne.s32.totalorder %s90, %s92
      %p96 = scmp.eq.s32.totalorder %s14, 0
      %p97 = por %p95, %p96
      %p98 = scmp.ne.s32.totalorder %s90, %s92
      %p99 = scmp.eq.s32.totalorder %s19, 1
      %p100 = por %p98, %p99
      %p101 = scmp.ne.s32.totalorder %s92, %s93
      %p102 = scmp.eq.s32.totalorder %s19, 0
      %p103 = por %p101, %p102
      %p104 = scmp.ne.s32.totalorder %s92, %s93
      %p105 = scmp.eq.s32.totalorder %s20, 1
      %p106 = por %p104, %p105
      %p108 = scmp.ne.s32.totalorder %s93, %s107
      %p109 = scmp.eq.s32.totalorder %s20, 0
      %p110 = por %p108, %p109
      %s111 = ssub.s32 %s14, %s21
      %p112 = scmp.eq.s32.totalorder %s111, 0
      %s114 = sadd.s32 %s113, 1
      %s115 = scalar_select %p112, %s113, %s114
      %p118 = pneg %p112
      %p119 = scmp.eq.s32.totalorder %s14, 1
      %p120 = por %p118, %p119
      %p121 = scmp.ne.s32.totalorder %s113, %s116
      %p122 = scmp.eq.s32.totalorder %s14, 0
      %p123 = por %p121, %p122
      %p124 = scmp.ne.s32.totalorder %s113, %s116
      %p125 = scmp.eq.s32.totalorder %s19, 1
      %p126 = por %p124, %p125
      %p127 = scmp.ne.s32.totalorder %s116, %s117
      %p128 = scmp.eq.s32.totalorder %s19, 0
      %p129 = por %p127, %p128
      %p130 = scmp.ne.s32.totalorder %s116, %s117
      %p131 = scmp.eq.s32.totalorder %s20, 1
      %p132 = por %p130, %p131
      %p134 = scmp.ne.s32.totalorder %s117, %s133
      %p135 = scmp.eq.s32.totalorder %s20, 0
      %p136 = por %p134, %p135
      %p137 = scmp.le.s32.totalorder 1, %s14
      %p138 = scmp.lt.s32.totalorder %s14, 3
      %p139 = pnand %p137, %p138
      %p140 = pneg %p139
      // Predicated region
      $region9: #{tpu_custom_call.1} parent=5 // pred_check
        _
      $region10: #{tpu_custom_call.1} parent=5 // pred_check_branch
        %142 = sbr.rel (%p139) target = $region12
      $region11: #{tpu_custom_call.1} parent=5 // pred_region
        %s143 = ssub.s32 %s14, 1
        // Predicated region
        $region13: #{tpu_custom_call.1} parent=11 // pred_check
          %p144 = pneg %p61
        $region14: #{tpu_custom_call.1} parent=11 // pred_check_branch
          %146 = sbr.rel (%p144) target = $region16
        $region15: #{tpu_custom_call.1} parent=11 // pred_region
          _
        $region16: #{tpu_custom_call.1} parent=11 // pred_fallthru
          _
        // Predicated region
        $region17: #{tpu_custom_call.1} parent=11 // pred_check
          %p147 = pneg %p82
        $region18: #{tpu_custom_call.1} parent=11 // pred_check_branch
          %149 = sbr.rel (%p147) target = $region20
        $region19: #{tpu_custom_call.1} parent=11 // pred_region
          _
        $region20: #{tpu_custom_call.1} parent=11 // pred_fallthru
          _
        // Predicated region
        $region21: #{tpu_custom_call.1} parent=11 // pred_check
          %p150 = pneg %p103
        $region22: #{tpu_custom_call.1} parent=11 // pred_check_branch
          %152 = sbr.rel (%p150) target = $region24
        $region23: #{tpu_custom_call.1} parent=11 // pred_region
          _
        $region24: #{tpu_custom_call.1} parent=11 // pred_fallthru
          _
      $region12: #{tpu_custom_call.1} parent=5 // pred_fallthru
        _
      %p153 = scmp.lt.s32.totalorder %s14, 2
      // Predicated region
      $region25: #{tpu_custom_call.1} parent=5 // pred_check
        %p154 = pneg %p153
      $region26: #{tpu_custom_call.1} parent=5 // pred_check_branch
        %156 = sbr.rel (%p154) target = $region28
      $region27: #{tpu_custom_call.1} parent=5 // pred_region
        // Predicated region
        $region29: #{tpu_custom_call.1} parent=27 // pred_check
          %p157 = pneg %p34
        $region30: #{tpu_custom_call.1} parent=27 // pred_check_branch
          %159 = sbr.rel (%p157) target = $region32
        $region31: #{tpu_custom_call.1} parent=27 // pred_region
          %s160 = smul.u32 8, %s14
          %p161 = scmp.lt.s32.totalorder %s160, 15
          %s162 = scalar_select %p161, %s160, 15
          %s163 = smul.addr %s162, 2
          %s164 = scalar_lea.vmem %s0, %s163
          %s165 = smul.u32 8, %s14
        $region32: #{tpu_custom_call.1} parent=27 // pred_fallthru
          _
      $region28: #{tpu_custom_call.1} parent=5 // pred_fallthru
        _
      %p166 = scmp.le.s32.totalorder 1, %s14
      %p167 = scmp.lt.s32.totalorder %s14, 3
      %p168 = pnand %p166, %p167
      %p169 = pneg %p168
      // Predicated region
      $region33: #{tpu_custom_call.1} parent=5 // pred_check
        _
      $region34: #{tpu_custom_call.1} parent=5 // pred_check_branch
        %171 = sbr.rel (%p168) target = $region36
      $region35: #{tpu_custom_call.1} parent=5 // pred_region
        %s172 = ssub.s32 %s14, 1
        %s173 = smul.u32 8, %s19
        %p174 = scmp.lt.s32.totalorder %s173, 15
        %s175 = scalar_select %p174, %s173, 15
        %s176 = smul.addr %s175, 2
        %s177 = scalar_lea.vmem %s0, %s176
        %p178 = pneg %p40
        %p179 = pneg %p37
        %p180 = pneg %p61
        %p181 = pneg %p58
        %p182 = pneg %p82
        %p183 = pneg %p79
        %p184 = pneg %p103
        %p185 = pneg %p100
        %p186 = pneg %p129
        %p187 = pneg %p126
        %s188 = sand.u32 %s116, 1
        %s189 = scalar_lea.sflag [#allocation4], %s188
        %s190 = sand.u32 %s116, 1
        %s191 = smul.addr %s190, 8
        %s192 = scalar_lea.vmem [#allocation3], %s191
        %s193 = smul.u32 8, %s19
        %p194 = scmp.lt.s32.totalorder %s193, 15
        %s195 = scalar_select %p194, %s193, 15
        %s196 = smul.addr %s195, 2
        %s197 = scalar_lea.vmem %s0, %s196
        %s198 = smul.u32 8, %s19
        %v199 = vld [vmem:[%s1] sm:$0xff]
        %v200 = vld [vmem:[%s1 + $0x8] sm:$0xff]
        %v201 = vld [vmem:[%s1 + $0x10] sm:$0xff]
        %v202 = vld [vmem:[%s1 + $0x18] sm:$0xff]
        %v203 = vld [vmem:[%s1 + $0x20] sm:$0xff]
        %v204 = vld [vmem:[%s1 + $0x28] sm:$0xff]
        %v205 = vld [vmem:[%s1 + $0x30] sm:$0xff]
        %v206 = vld [vmem:[%s1 + $0x38] sm:$0xff]
        %v207 = vld [vmem:[%s1 + $0x40] sm:$0xff]
        %v208 = vld [vmem:[%s1 + $0x48] sm:$0xff]
        %v209 = vld [vmem:[%s1 + $0x50] sm:$0xff]
        %v210 = vld [vmem:[%s1 + $0x58] sm:$0xff]
        %v211 = vld [vmem:[%s1 + $0x60] sm:$0xff]
        %v212 = vld [vmem:[%s1 + $0x68] sm:$0xff]
        %v213 = vld [vmem:[%s1 + $0x70] sm:$0xff]
        %v214 = vld [vmem:[%s1 + $0x78] sm:$0xff]
        %v215 = vld [vmem:[%s1 + $0x80] sm:$0xff]
        %v216 = vld [vmem:[%s1 + $0x88] sm:$0xff]
        %v217 = vld [vmem:[%s1 + $0x90] sm:$0xff]
        %v218 = vld [vmem:[%s1 + $0x98] sm:$0xff]
        %v219 = vld [vmem:[%s1 + $0xa0] sm:$0xff]
        %v220 = vld [vmem:[%s1 + $0xa8] sm:$0xff]
        %v221 = vld [vmem:[%s1 + $0xb0] sm:$0xff]
        %v222 = vld [vmem:[%s1 + $0xb8] sm:$0xff]
        %v223 = vld [vmem:[%s1 + $0xc0] sm:$0xff]
        %v224 = vld [vmem:[%s1 + $0xc8] sm:$0xff]
        %v225 = vld [vmem:[%s1 + $0xd0] sm:$0xff]
        %v226 = vld [vmem:[%s1 + $0xd8] sm:$0xff]
        %v227 = vld [vmem:[%s1 + $0xe0] sm:$0xff]
        %v228 = vld [vmem:[%s1 + $0xe8] sm:$0xff]
        %v229 = vld [vmem:[%s1 + $0xf0] sm:$0xff]
        %v230 = vld [vmem:[%s1 + $0xf8] sm:$0xff]
        %v231 = vld [vmem:[%s197] ss:$2 sm:$0xff]
        %233 = vset.pattern.permute.xlu0 0
        %234 = vperm.xlu0 %233, %v199
        %v235 = vpop.permute.xlu0 %234
        %238 = vset.pattern.permute.xlu0 0
        %239 = vperm.xlu0 %238, %v200
        %v240 = vpop.permute.xlu0 %239
        %243 = vset.pattern.permute.xlu0 0
        %244 = vperm.xlu0 %243, %v201
        %v245 = vpop.permute.xlu0 %244
        %248 = vset.pattern.permute.xlu0 0
        %249 = vperm.xlu0 %248, %v202
        %v250 = vpop.permute.xlu0 %249
        %253 = vset.pattern.permute.xlu0 0
        %254 = vperm.xlu0 %253, %v203
        %v255 = vpop.permute.xlu0 %254
        %258 = vset.pattern.permute.xlu0 0
        %259 = vperm.xlu0 %258, %v204
        %v260 = vpop.permute.xlu0 %259
        %263 = vset.pattern.permute.xlu0 0
        %264 = vperm.xlu0 %263, %v205
        %v265 = vpop.permute.xlu0 %264
        %268 = vset.pattern.permute.xlu0 0
        %269 = vperm.xlu0 %268, %v206
        %v270 = vpop.permute.xlu0 %269
        %273 = vset.pattern.permute.xlu0 0
        %274 = vperm.xlu0 %273, %v207
        %v275 = vpop.permute.xlu0 %274
        %278 = vset.pattern.permute.xlu0 0
        %279 = vperm.xlu0 %278, %v208
        %v280 = vpop.permute.xlu0 %279
        %283 = vset.pattern.permute.xlu0 0
        %284 = vperm.xlu0 %283, %v209
        %v285 = vpop.permute.xlu0 %284
        %288 = vset.pattern.permute.xlu0 0
        %289 = vperm.xlu0 %288, %v210
        %v290 = vpop.permute.xlu0 %289
        %293 = vset.pattern.permute.xlu0 0
        %294 = vperm.xlu0 %293, %v211
        %v295 = vpop.permute.xlu0 %294
        %298 = vset.pattern.permute.xlu0 0
        %299 = vperm.xlu0 %298, %v212
        %v300 = vpop.permute.xlu0 %299
        %303 = vset.pattern.permute.xlu0 0
        %304 = vperm.xlu0 %303, %v213
        %v305 = vpop.permute.xlu0 %304
        %308 = vset.pattern.permute.xlu0 0
        %309 = vperm.xlu0 %308, %v214
        %v310 = vpop.permute.xlu0 %309
        %313 = vset.pattern.permute.xlu0 0
        %314 = vperm.xlu0 %313, %v215
        %v315 = vpop.permute.xlu0 %314
        %318 = vset.pattern.permute.xlu0 0
        %319 = vperm.xlu0 %318, %v216
        %v320 = vpop.permute.xlu0 %319
        %323 = vset.pattern.permute.xlu0 0
        %324 = vperm.xlu0 %323, %v217
        %v325 = vpop.permute.xlu0 %324
        %328 = vset.pattern.permute.xlu0 0
        %329 = vperm.xlu0 %328, %v218
        %v330 = vpop.permute.xlu0 %329
        %333 = vset.pattern.permute.xlu0 0
        %334 = vperm.xlu0 %333, %v219
        %v335 = vpop.permute.xlu0 %334
        %338 = vset.pattern.permute.xlu0 0
        %339 = vperm.xlu0 %338, %v220
        %v340 = vpop.permute.xlu0 %339
        %343 = vset.pattern.permute.xlu0 0
        %344 = vperm.xlu0 %343, %v221
        %v345 = vpop.permute.xlu0 %344
        %348 = vset.pattern.permute.xlu0 0
        %349 = vperm.xlu0 %348, %v222
        %v350 = vpop.permute.xlu0 %349
        %353 = vset.pattern.permute.xlu0 0
        %354 = vperm.xlu0 %353, %v223
        %v355 = vpop.permute.xlu0 %354
        %358 = vset.pattern.permute.xlu0 0
        %359 = vperm.xlu0 %358, %v224
        %v360 = vpop.permute.xlu0 %359
        %363 = vset.pattern.permute.xlu0 0
        %364 = vperm.xlu0 %363, %v225
        %v365 = vpop.permute.xlu0 %364
        %368 = vset.pattern.permute.xlu0 0
        %369 = vperm.xlu0 %368, %v226
        %v370 = vpop.permute.xlu0 %369
        %373 = vset.pattern.permute.xlu0 0
        %374 = vperm.xlu0 %373, %v227
        %v375 = vpop.permute.xlu0 %374
        %378 = vset.pattern.permute.xlu0 0
        %379 = vperm.xlu0 %378, %v228
        %v380 = vpop.permute.xlu0 %379
        %383 = vset.pattern.permute.xlu0 0
        %384 = vperm.xlu0 %383, %v229
        %v385 = vpop.permute.xlu0 %384
        %388 = vset.pattern.permute.xlu0 0
        %389 = vperm.xlu0 %388, %v230
        %v390 = vpop.permute.xlu0 %389
        %v393 = vperm.slane %v231, 0
        %v394 = vperm.slane %v231, 1
        %v395 = vperm.slane %v231, 2
        %v396 = vperm.slane %v231, 3
        %v397 = vperm.slane %v231, 4
        %v398 = vperm.slane %v231, 5
        %v399 = vperm.slane %v231, 6
        %v400 = vperm.slane %v231, 7
        %v409 = vmul.f32 %v235, %v393
        %v410 = vmul.f32 %v235, %v394
        %v411 = vmul.f32 %v235, %v395
        %v412 = vmul.f32 %v235, %v396
        %v413 = vmul.f32 %v235, %v397
        %v414 = vmul.f32 %v235, %v398
        %v415 = vmul.f32 %v235, %v399
        %v416 = vmul.f32 %v235, %v400
        %v417 = vmul.f32 %v240, %v393
        %v418 = vmul.f32 %v240, %v394
        %v419 = vmul.f32 %v240, %v395
        %v420 = vmul.f32 %v240, %v396
        %v421 = vmul.f32 %v240, %v397
        %v422 = vmul.f32 %v240, %v398
        %v423 = vmul.f32 %v240, %v399
        %v424 = vmul.f32 %v240, %v400
        %v425 = vmul.f32 %v245, %v393
        %v426 = vmul.f32 %v245, %v394
        %v427 = vmul.f32 %v245, %v395
        %v428 = vmul.f32 %v245, %v396
        %v429 = vmul.f32 %v245, %v397
        %v430 = vmul.f32 %v245, %v398
        %v431 = vmul.f32 %v245, %v399
        %v432 = vmul.f32 %v245, %v400
        %v433 = vmul.f32 %v250, %v393
        %v434 = vmul.f32 %v250, %v394
        %v435 = vmul.f32 %v250, %v395
        %v436 = vmul.f32 %v250, %v396
        %v437 = vmul.f32 %v250, %v397
        %v438 = vmul.f32 %v250, %v398
        %v439 = vmul.f32 %v250, %v399
        %v440 = vmul.f32 %v250, %v400
        %v441 = vmul.f32 %v255, %v393
        %v442 = vmul.f32 %v255, %v394
        %v443 = vmul.f32 %v255, %v395
        %v444 = vmul.f32 %v255, %v396
        %v445 = vmul.f32 %v255, %v397
        %v446 = vmul.f32 %v255, %v398
        %v447 = vmul.f32 %v255, %v399
        %v448 = vmul.f32 %v255, %v400
        %v449 = vmul.f32 %v260, %v393
        %v450 = vmul.f32 %v260, %v394
        %v451 = vmul.f32 %v260, %v395
        %v452 = vmul.f32 %v260, %v396
        %v453 = vmul.f32 %v260, %v397
        %v454 = vmul.f32 %v260, %v398
        %v455 = vmul.f32 %v260, %v399
        %v456 = vmul.f32 %v260, %v400
        %v457 = vmul.f32 %v265, %v393
        %v458 = vmul.f32 %v265, %v394
        %v459 = vmul.f32 %v265, %v395
        %v460 = vmul.f32 %v265, %v396
        %v461 = vmul.f32 %v265, %v397
        %v462 = vmul.f32 %v265, %v398
        %v463 = vmul.f32 %v265, %v399
        %v464 = vmul.f32 %v265, %v400
        %v465 = vmul.f32 %v270, %v393
        %v466 = vmul.f32 %v270, %v394
        %v467 = vmul.f32 %v270, %v395
        %v468 = vmul.f32 %v270, %v396
        %v469 = vmul.f32 %v270, %v397
        %v470 = vmul.f32 %v270, %v398
        %v471 = vmul.f32 %v270, %v399
        %v472 = vmul.f32 %v270, %v400
        %v473 = vmul.f32 %v275, %v393
        %v474 = vmul.f32 %v275, %v394
        %v475 = vmul.f32 %v275, %v395
        %v476 = vmul.f32 %v275, %v396
        %v477 = vmul.f32 %v275, %v397
        %v478 = vmul.f32 %v275, %v398
        %v479 = vmul.f32 %v275, %v399
        %v480 = vmul.f32 %v275, %v400
        %v481 = vmul.f32 %v280, %v393
        %v482 = vmul.f32 %v280, %v394
        %v483 = vmul.f32 %v280, %v395
        %v484 = vmul.f32 %v280, %v396
        %v485 = vmul.f32 %v280, %v397
        %v486 = vmul.f32 %v280, %v398
        %v487 = vmul.f32 %v280, %v399
        %v488 = vmul.f32 %v280, %v400
        %v489 = vmul.f32 %v285, %v393
        %v490 = vmul.f32 %v285, %v394
        %v491 = vmul.f32 %v285, %v395
        %v492 = vmul.f32 %v285, %v396
        %v493 = vmul.f32 %v285, %v397
        %v494 = vmul.f32 %v285, %v398
        %v495 = vmul.f32 %v285, %v399
        %v496 = vmul.f32 %v285, %v400
        %v497 = vmul.f32 %v290, %v393
        %v498 = vmul.f32 %v290, %v394
        %v499 = vmul.f32 %v290, %v395
        %v500 = vmul.f32 %v290, %v396
        %v501 = vmul.f32 %v290, %v397
        %v502 = vmul.f32 %v290, %v398
        %v503 = vmul.f32 %v290, %v399
        %v504 = vmul.f32 %v290, %v400
        %v505 = vmul.f32 %v295, %v393
        %v506 = vmul.f32 %v295, %v394
        %v507 = vmul.f32 %v295, %v395
        %v508 = vmul.f32 %v295, %v396
        %v509 = vmul.f32 %v295, %v397
        %v510 = vmul.f32 %v295, %v398
        %v511 = vmul.f32 %v295, %v399
        %v512 = vmul.f32 %v295, %v400
        %v513 = vmul.f32 %v300, %v393
        %v514 = vmul.f32 %v300, %v394
        %v515 = vmul.f32 %v300, %v395
        %v516 = vmul.f32 %v300, %v396
        %v517 = vmul.f32 %v300, %v397
        %v518 = vmul.f32 %v300, %v398
        %v519 = vmul.f32 %v300, %v399
        %v520 = vmul.f32 %v300, %v400
        %v521 = vmul.f32 %v305, %v393
        %v522 = vmul.f32 %v305, %v394
        %v523 = vmul.f32 %v305, %v395
        %v524 = vmul.f32 %v305, %v396
        %v525 = vmul.f32 %v305, %v397
        %v526 = vmul.f32 %v305, %v398
        %v527 = vmul.f32 %v305, %v399
        %v528 = vmul.f32 %v305, %v400
        %v529 = vmul.f32 %v310, %v393
        %v530 = vmul.f32 %v310, %v394
        %v531 = vmul.f32 %v310, %v395
        %v532 = vmul.f32 %v310, %v396
        %v533 = vmul.f32 %v310, %v397
        %v534 = vmul.f32 %v310, %v398
        %v535 = vmul.f32 %v310, %v399
        %v536 = vmul.f32 %v310, %v400
        %v537 = vmul.f32 %v315, %v393
        %v538 = vmul.f32 %v315, %v394
        %v539 = vmul.f32 %v315, %v395
        %v540 = vmul.f32 %v315, %v396
        %v541 = vmul.f32 %v315, %v397
        %v542 = vmul.f32 %v315, %v398
        %v543 = vmul.f32 %v315, %v399
        %v544 = vmul.f32 %v315, %v400
        %v545 = vmul.f32 %v320, %v393
        %v546 = vmul.f32 %v320, %v394
        %v547 = vmul.f32 %v320, %v395
        %v548 = vmul.f32 %v320, %v396
        %v549 = vmul.f32 %v320, %v397
        %v550 = vmul.f32 %v320, %v398
        %v551 = vmul.f32 %v320, %v399
        %v552 = vmul.f32 %v320, %v400
        %v553 = vmul.f32 %v325, %v393
        %v554 = vmul.f32 %v325, %v394
        %v555 = vmul.f32 %v325, %v395
        %v556 = vmul.f32 %v325, %v396
        %v557 = vmul.f32 %v325, %v397
        %v558 = vmul.f32 %v325, %v398
        %v559 = vmul.f32 %v325, %v399
        %v560 = vmul.f32 %v325, %v400
        %v561 = vmul.f32 %v330, %v393
        %v562 = vmul.f32 %v330, %v394
        %v563 = vmul.f32 %v330, %v395
        %v564 = vmul.f32 %v330, %v396
        %v565 = vmul.f32 %v330, %v397
        %v566 = vmul.f32 %v330, %v398
        %v567 = vmul.f32 %v330, %v399
        %v568 = vmul.f32 %v330, %v400
        %v569 = vmul.f32 %v335, %v393
        %v570 = vmul.f32 %v335, %v394
        %v571 = vmul.f32 %v335, %v395
        %v572 = vmul.f32 %v335, %v396
        %v573 = vmul.f32 %v335, %v397
        %v574 = vmul.f32 %v335, %v398
        %v575 = vmul.f32 %v335, %v399
        %v576 = vmul.f32 %v335, %v400
        %v577 = vmul.f32 %v340, %v393
        %v578 = vmul.f32 %v340, %v394
        %v579 = vmul.f32 %v340, %v395
        %v580 = vmul.f32 %v340, %v396
        %v581 = vmul.f32 %v340, %v397
        %v582 = vmul.f32 %v340, %v398
        %v583 = vmul.f32 %v340, %v399
        %v584 = vmul.f32 %v340, %v400
        %v585 = vmul.f32 %v345, %v393
        %v586 = vmul.f32 %v345, %v394
        %v587 = vmul.f32 %v345, %v395
        %v588 = vmul.f32 %v345, %v396
        %v589 = vmul.f32 %v345, %v397
        %v590 = vmul.f32 %v345, %v398
        %v591 = vmul.f32 %v345, %v399
        %v592 = vmul.f32 %v345, %v400
        %v593 = vmul.f32 %v350, %v393
        %v594 = vmul.f32 %v350, %v394
        %v595 = vmul.f32 %v350, %v395
        %v596 = vmul.f32 %v350, %v396
        %v597 = vmul.f32 %v350, %v397
        %v598 = vmul.f32 %v350, %v398
        %v599 = vmul.f32 %v350, %v399
        %v600 = vmul.f32 %v350, %v400
        %v601 = vmul.f32 %v355, %v393
        %v602 = vmul.f32 %v355, %v394
        %v603 = vmul.f32 %v355, %v395
        %v604 = vmul.f32 %v355, %v396
        %v605 = vmul.f32 %v355, %v397
        %v606 = vmul.f32 %v355, %v398
        %v607 = vmul.f32 %v355, %v399
        %v608 = vmul.f32 %v355, %v400
        %v609 = vmul.f32 %v360, %v393
        %v610 = vmul.f32 %v360, %v394
        %v611 = vmul.f32 %v360, %v395
        %v612 = vmul.f32 %v360, %v396
        %v613 = vmul.f32 %v360, %v397
        %v614 = vmul.f32 %v360, %v398
        %v615 = vmul.f32 %v360, %v399
        %v616 = vmul.f32 %v360, %v400
        %v617 = vmul.f32 %v365, %v393
        %v618 = vmul.f32 %v365, %v394
        %v619 = vmul.f32 %v365, %v395
        %v620 = vmul.f32 %v365, %v396
        %v621 = vmul.f32 %v365, %v397
        %v622 = vmul.f32 %v365, %v398
        %v623 = vmul.f32 %v365, %v399
        %v624 = vmul.f32 %v365, %v400
        %v625 = vmul.f32 %v370, %v393
        %v626 = vmul.f32 %v370, %v394
        %v627 = vmul.f32 %v370, %v395
        %v628 = vmul.f32 %v370, %v396
        %v629 = vmul.f32 %v370, %v397
        %v630 = vmul.f32 %v370, %v398
        %v631 = vmul.f32 %v370, %v399
        %v632 = vmul.f32 %v370, %v400
        %v633 = vmul.f32 %v375, %v393
        %v634 = vmul.f32 %v375, %v394
        %v635 = vmul.f32 %v375, %v395
        %v636 = vmul.f32 %v375, %v396
        %v637 = vmul.f32 %v375, %v397
        %v638 = vmul.f32 %v375, %v398
        %v639 = vmul.f32 %v375, %v399
        %v640 = vmul.f32 %v375, %v400
        %v641 = vmul.f32 %v380, %v393
        %v642 = vmul.f32 %v380, %v394
        %v643 = vmul.f32 %v380, %v395
        %v644 = vmul.f32 %v380, %v396
        %v645 = vmul.f32 %v380, %v397
        %v646 = vmul.f32 %v380, %v398
        %v647 = vmul.f32 %v380, %v399
        %v648 = vmul.f32 %v380, %v400
        %v649 = vmul.f32 %v385, %v393
        %v650 = vmul.f32 %v385, %v394
        %v651 = vmul.f32 %v385, %v395
        %v652 = vmul.f32 %v385, %v396
        %v653 = vmul.f32 %v385, %v397
        %v654 = vmul.f32 %v385, %v398
        %v655 = vmul.f32 %v385, %v399
        %v656 = vmul.f32 %v385, %v400
        %v657 = vmul.f32 %v390, %v393
        %v658 = vmul.f32 %v390, %v394
        %v659 = vmul.f32 %v390, %v395
        %v660 = vmul.f32 %v390, %v396
        %v661 = vmul.f32 %v390, %v397
        %v662 = vmul.f32 %v390, %v398
        %v663 = vmul.f32 %v390, %v399
        %v664 = vmul.f32 %v390, %v400
        %665 = vset.pattern.permute.xlu0 2
        %666 = vperm.xlu0 %665, %v199
        %v667 = vpop.permute.xlu0 %666
        %669 = vset.pattern.permute.xlu0 2
        %670 = vperm.xlu0 %669, %v200
        %v671 = vpop.permute.xlu0 %670
        %673 = vset.pattern.permute.xlu0 2
        %674 = vperm.xlu0 %673, %v201
        %v675 = vpop.permute.xlu0 %674
        %677 = vset.pattern.permute.xlu0 2
        %678 = vperm.xlu0 %677, %v202
        %v679 = vpop.permute.xlu0 %678
        %681 = vset.pattern.permute.xlu0 2
        %682 = vperm.xlu0 %681, %v203
        %v683 = vpop.permute.xlu0 %682
        %685 = vset.pattern.permute.xlu0 2
        %686 = vperm.xlu0 %685, %v204
        %v687 = vpop.permute.xlu0 %686
        %689 = vset.pattern.permute.xlu0 2
        %690 = vperm.xlu0 %689, %v205
        %v691 = vpop.permute.xlu0 %690
        %693 = vset.pattern.permute.xlu0 2
        %694 = vperm.xlu0 %693, %v206
        %v695 = vpop.permute.xlu0 %694
        %697 = vset.pattern.permute.xlu0 2
        %698 = vperm.xlu0 %697, %v207
        %v699 = vpop.permute.xlu0 %698
        %701 = vset.pattern.permute.xlu0 2
        %702 = vperm.xlu0 %701, %v208
        %v703 = vpop.permute.xlu0 %702
        %705 = vset.pattern.permute.xlu0 2
        %706 = vperm.xlu0 %705, %v209
        %v707 = vpop.permute.xlu0 %706
        %709 = vset.pattern.permute.xlu0 2
        %710 = vperm.xlu0 %709, %v210
        %v711 = vpop.permute.xlu0 %710
        %713 = vset.pattern.permute.xlu0 2
        %714 = vperm.xlu0 %713, %v211
        %v715 = vpop.permute.xlu0 %714
        %717 = vset.pattern.permute.xlu0 2
        %718 = vperm.xlu0 %717, %v212
        %v719 = vpop.permute.xlu0 %718
        %721 = vset.pattern.permute.xlu0 2
        %722 = vperm.xlu0 %721, %v213
        %v723 = vpop.permute.xlu0 %722
        %725 = vset.pattern.permute.xlu0 2
        %726 = vperm.xlu0 %725, %v214
        %v727 = vpop.permute.xlu0 %726
        %729 = vset.pattern.permute.xlu0 2
        %730 = vperm.xlu0 %729, %v215
        %v731 = vpop.permute.xlu0 %730
        %733 = vset.pattern.permute.xlu0 2
        %734 = vperm.xlu0 %733, %v216
        %v735 = vpop.permute.xlu0 %734
        %737 = vset.pattern.permute.xlu0 2
        %738 = vperm.xlu0 %737, %v217
        %v739 = vpop.permute.xlu0 %738
        %741 = vset.pattern.permute.xlu0 2
        %742 = vperm.xlu0 %741, %v218
        %v743 = vpop.permute.xlu0 %742
        %745 = vset.pattern.permute.xlu0 2
        %746 = vperm.xlu0 %745, %v219
        %v747 = vpop.permute.xlu0 %746
        %749 = vset.pattern.permute.xlu0 2
        %750 = vperm.xlu0 %749, %v220
        %v751 = vpop.permute.xlu0 %750
        %753 = vset.pattern.permute.xlu0 2
        %754 = vperm.xlu0 %753, %v221
        %v755 = vpop.permute.xlu0 %754
        %757 = vset.pattern.permute.xlu0 2
        %758 = vperm.xlu0 %757, %v222
        %v759 = vpop.permute.xlu0 %758
        %761 = vset.pattern.permute.xlu0 2
        %762 = vperm.xlu0 %761, %v223
        %v763 = vpop.permute.xlu0 %762
        %765 = vset.pattern.permute.xlu0 2
        %766 = vperm.xlu0 %765, %v224
        %v767 = vpop.permute.xlu0 %766
        %769 = vset.pattern.permute.xlu0 2
        %770 = vperm.xlu0 %769, %v225
        %v771 = vpop.permute.xlu0 %770
        %773 = vset.pattern.permute.xlu0 2
        %774 = vperm.xlu0 %773, %v226
        %v775 = vpop.permute.xlu0 %774
        %777 = vset.pattern.permute.xlu0 2
        %778 = vperm.xlu0 %777, %v227
        %v779 = vpop.permute.xlu0 %778
        %781 = vset.pattern.permute.xlu0 2
        %782 = vperm.xlu0 %781, %v228
        %v783 = vpop.permute.xlu0 %782
        %785 = vset.pattern.permute.xlu0 2
        %786 = vperm.xlu0 %785, %v229
        %v787 = vpop.permute.xlu0 %786
        %789 = vset.pattern.permute.xlu0 2
        %790 = vperm.xlu0 %789, %v230
        %v791 = vpop.permute.xlu0 %790
        %v793 = vadd.f32 %v667, %v409
        %v794 = vadd.f32 %v667, %v410
        %v795 = vadd.f32 %v667, %v411
        %v796 = vadd.f32 %v667, %v412
        %v797 = vadd.f32 %v667, %v413
        %v798 = vadd.f32 %v667, %v414
        %v799 = vadd.f32 %v667, %v415
        %v800 = vadd.f32 %v667, %v416
        %v801 = vadd.f32 %v671, %v417
        %v802 = vadd.f32 %v671, %v418
        %v803 = vadd.f32 %v671, %v419
        %v804 = vadd.f32 %v671, %v420
        %v805 = vadd.f32 %v671, %v421
        %v806 = vadd.f32 %v671, %v422
        %v807 = vadd.f32 %v671, %v423
        %v808 = vadd.f32 %v671, %v424
        %v809 = vadd.f32 %v675, %v425
        %v810 = vadd.f32 %v675, %v426
        %v811 = vadd.f32 %v675, %v427
        %v812 = vadd.f32 %v675, %v428
        %v813 = vadd.f32 %v675, %v429
        %v814 = vadd.f32 %v675, %v430
        %v815 = vadd.f32 %v675, %v431
        %v816 = vadd.f32 %v675, %v432
        %v817 = vadd.f32 %v679, %v433
        %v818 = vadd.f32 %v679, %v434
        %v819 = vadd.f32 %v679, %v435
        %v820 = vadd.f32 %v679, %v436
        %v821 = vadd.f32 %v679, %v437
        %v822 = vadd.f32 %v679, %v438
        %v823 = vadd.f32 %v679, %v439
        %v824 = vadd.f32 %v679, %v440
        %v825 = vadd.f32 %v683, %v441
        %v826 = vadd.f32 %v683, %v442
        %v827 = vadd.f32 %v683, %v443
        %v828 = vadd.f32 %v683, %v444
        %v829 = vadd.f32 %v683, %v445
        %v830 = vadd.f32 %v683, %v446
        %v831 = vadd.f32 %v683, %v447
        %v832 = vadd.f32 %v683, %v448
        %v833 = vadd.f32 %v687, %v449
        %v834 = vadd.f32 %v687, %v450
        %v835 = vadd.f32 %v687, %v451
        %v836 = vadd.f32 %v687, %v452
        %v837 = vadd.f32 %v687, %v453
        %v838 = vadd.f32 %v687, %v454
        %v839 = vadd.f32 %v687, %v455
        %v840 = vadd.f32 %v687, %v456
        %v841 = vadd.f32 %v691, %v457
        %v842 = vadd.f32 %v691, %v458
        %v843 = vadd.f32 %v691, %v459
        %v844 = vadd.f32 %v691, %v460
        %v845 = vadd.f32 %v691, %v461
        %v846 = vadd.f32 %v691, %v462
        %v847 = vadd.f32 %v691, %v463
        %v848 = vadd.f32 %v691, %v464
        %v849 = vadd.f32 %v695, %v465
        %v850 = vadd.f32 %v695, %v466
        %v851 = vadd.f32 %v695, %v467
        %v852 = vadd.f32 %v695, %v468
        %v853 = vadd.f32 %v695, %v469
        %v854 = vadd.f32 %v695, %v470
        %v855 = vadd.f32 %v695, %v471
        %v856 = vadd.f32 %v695, %v472
        %v857 = vadd.f32 %v699, %v473
        %v858 = vadd.f32 %v699, %v474
        %v859 = vadd.f32 %v699, %v475
        %v860 = vadd.f32 %v699, %v476
        %v861 = vadd.f32 %v699, %v477
        %v862 = vadd.f32 %v699, %v478
        %v863 = vadd.f32 %v699, %v479
        %v864 = vadd.f32 %v699, %v480
        %v865 = vadd.f32 %v703, %v481
        %v866 = vadd.f32 %v703, %v482
        %v867 = vadd.f32 %v703, %v483
        %v868 = vadd.f32 %v703, %v484
        %v869 = vadd.f32 %v703, %v485
        %v870 = vadd.f32 %v703, %v486
        %v871 = vadd.f32 %v703, %v487
        %v872 = vadd.f32 %v703, %v488
        %v873 = vadd.f32 %v707, %v489
        %v874 = vadd.f32 %v707, %v490
        %v875 = vadd.f32 %v707, %v491
        %v876 = vadd.f32 %v707, %v492
        %v877 = vadd.f32 %v707, %v493
        %v878 = vadd.f32 %v707, %v494
        %v879 = vadd.f32 %v707, %v495
        %v880 = vadd.f32 %v707, %v496
        %v881 = vadd.f32 %v711, %v497
        %v882 = vadd.f32 %v711, %v498
        %v883 = vadd.f32 %v711, %v499
        %v884 = vadd.f32 %v711, %v500
        %v885 = vadd.f32 %v711, %v501
        %v886 = vadd.f32 %v711, %v502
        %v887 = vadd.f32 %v711, %v503
        %v888 = vadd.f32 %v711, %v504
        %v889 = vadd.f32 %v715, %v505
        %v890 = vadd.f32 %v715, %v506
        %v891 = vadd.f32 %v715, %v507
        %v892 = vadd.f32 %v715, %v508
        %v893 = vadd.f32 %v715, %v509
        %v894 = vadd.f32 %v715, %v510
        %v895 = vadd.f32 %v715, %v511
        %v896 = vadd.f32 %v715, %v512
        %v897 = vadd.f32 %v719, %v513
        %v898 = vadd.f32 %v719, %v514
        %v899 = vadd.f32 %v719, %v515
        %v900 = vadd.f32 %v719, %v516
        %v901 = vadd.f32 %v719, %v517
        %v902 = vadd.f32 %v719, %v518
        %v903 = vadd.f32 %v719, %v519
        %v904 = vadd.f32 %v719, %v520
        %v905 = vadd.f32 %v723, %v521
        %v906 = vadd.f32 %v723, %v522
        %v907 = vadd.f32 %v723, %v523
        %v908 = vadd.f32 %v723, %v524
        %v909 = vadd.f32 %v723, %v525
        %v910 = vadd.f32 %v723, %v526
        %v911 = vadd.f32 %v723, %v527
        %v912 = vadd.f32 %v723, %v528
        %v913 = vadd.f32 %v727, %v529
        %v914 = vadd.f32 %v727, %v530
        %v915 = vadd.f32 %v727, %v531
        %v916 = vadd.f32 %v727, %v532
        %v917 = vadd.f32 %v727, %v533
        %v918 = vadd.f32 %v727, %v534
        %v919 = vadd.f32 %v727, %v535
        %v920 = vadd.f32 %v727, %v536
        %v921 = vadd.f32 %v731, %v537
        %v922 = vadd.f32 %v731, %v538
        %v923 = vadd.f32 %v731, %v539
        %v924 = vadd.f32 %v731, %v540
        %v925 = vadd.f32 %v731, %v541
        %v926 = vadd.f32 %v731, %v542
        %v927 = vadd.f32 %v731, %v543
        %v928 = vadd.f32 %v731, %v544
        %v929 = vadd.f32 %v735, %v545
        %v930 = vadd.f32 %v735, %v546
        %v931 = vadd.f32 %v735, %v547
        %v932 = vadd.f32 %v735, %v548
        %v933 = vadd.f32 %v735, %v549
        %v934 = vadd.f32 %v735, %v550
        %v935 = vadd.f32 %v735, %v551
        %v936 = vadd.f32 %v735, %v552
        %v937 = vadd.f32 %v739, %v553
        %v938 = vadd.f32 %v739, %v554
        %v939 = vadd.f32 %v739, %v555
        %v940 = vadd.f32 %v739, %v556
        %v941 = vadd.f32 %v739, %v557
        %v942 = vadd.f32 %v739, %v558
        %v943 = vadd.f32 %v739, %v559
        %v944 = vadd.f32 %v739, %v560
        %v945 = vadd.f32 %v743, %v561
        %v946 = vadd.f32 %v743, %v562
        %v947 = vadd.f32 %v743, %v563
        %v948 = vadd.f32 %v743, %v564
        %v949 = vadd.f32 %v743, %v565
        %v950 = vadd.f32 %v743, %v566
        %v951 = vadd.f32 %v743, %v567
        %v952 = vadd.f32 %v743, %v568
        %v953 = vadd.f32 %v747, %v569
        %v954 = vadd.f32 %v747, %v570
        %v955 = vadd.f32 %v747, %v571
        %v956 = vadd.f32 %v747, %v572
        %v957 = vadd.f32 %v747, %v573
        %v958 = vadd.f32 %v747, %v574
        %v959 = vadd.f32 %v747, %v575
        %v960 = vadd.f32 %v747, %v576
        %v961 = vadd.f32 %v751, %v577
        %v962 = vadd.f32 %v751, %v578
        %v963 = vadd.f32 %v751, %v579
        %v964 = vadd.f32 %v751, %v580
        %v965 = vadd.f32 %v751, %v581
        %v966 = vadd.f32 %v751, %v582
        %v967 = vadd.f32 %v751, %v583
        %v968 = vadd.f32 %v751, %v584
        %v969 = vadd.f32 %v755, %v585
        %v970 = vadd.f32 %v755, %v586
        %v971 = vadd.f32 %v755, %v587
        %v972 = vadd.f32 %v755, %v588
        %v973 = vadd.f32 %v755, %v589
        %v974 = vadd.f32 %v755, %v590
        %v975 = vadd.f32 %v755, %v591
        %v976 = vadd.f32 %v755, %v592
        %v977 = vadd.f32 %v759, %v593
        %v978 = vadd.f32 %v759, %v594
        %v979 = vadd.f32 %v759, %v595
        %v980 = vadd.f32 %v759, %v596
        %v981 = vadd.f32 %v759, %v597
        %v982 = vadd.f32 %v759, %v598
        %v983 = vadd.f32 %v759, %v599
        %v984 = vadd.f32 %v759, %v600
        %v985 = vadd.f32 %v763, %v601
        %v986 = vadd.f32 %v763, %v602
        %v987 = vadd.f32 %v763, %v603
        %v988 = vadd.f32 %v763, %v604
        %v989 = vadd.f32 %v763, %v605
        %v990 = vadd.f32 %v763, %v606
        %v991 = vadd.f32 %v763, %v607
        %v992 = vadd.f32 %v763, %v608
        %v993 = vadd.f32 %v767, %v609
        %v994 = vadd.f32 %v767, %v610
        %v995 = vadd.f32 %v767, %v611
        %v996 = vadd.f32 %v767, %v612
        %v997 = vadd.f32 %v767, %v613
        %v998 = vadd.f32 %v767, %v614
        %v999 = vadd.f32 %v767, %v615
        %v1000 = vadd.f32 %v767, %v616
        %v1001 = vadd.f32 %v771, %v617
        %v1002 = vadd.f32 %v771, %v618
        %v1003 = vadd.f32 %v771, %v619
        %v1004 = vadd.f32 %v771, %v620
        %v1005 = vadd.f32 %v771, %v621
        %v1006 = vadd.f32 %v771, %v622
        %v1007 = vadd.f32 %v771, %v623
        %v1008 = vadd.f32 %v771, %v624
        %v1009 = vadd.f32 %v775, %v625
        %v1010 = vadd.f32 %v775, %v626
        %v1011 = vadd.f32 %v775, %v627
        %v1012 = vadd.f32 %v775, %v628
        %v1013 = vadd.f32 %v775, %v629
        %v1014 = vadd.f32 %v775, %v630
        %v1015 = vadd.f32 %v775, %v631
        %v1016 = vadd.f32 %v775, %v632
        %v1017 = vadd.f32 %v779, %v633
        %v1018 = vadd.f32 %v779, %v634
        %v1019 = vadd.f32 %v779, %v635
        %v1020 = vadd.f32 %v779, %v636
        %v1021 = vadd.f32 %v779, %v637
        %v1022 = vadd.f32 %v779, %v638
        %v1023 = vadd.f32 %v779, %v639
        %v1024 = vadd.f32 %v779, %v640
        %v1025 = vadd.f32 %v783, %v641
        %v1026 = vadd.f32 %v783, %v642
        %v1027 = vadd.f32 %v783, %v643
        %v1028 = vadd.f32 %v783, %v644
        %v1029 = vadd.f32 %v783, %v645
        %v1030 = vadd.f32 %v783, %v646
        %v1031 = vadd.f32 %v783, %v647
        %v1032 = vadd.f32 %v783, %v648
        %v1033 = vadd.f32 %v787, %v649
        %v1034 = vadd.f32 %v787, %v650
        %v1035 = vadd.f32 %v787, %v651
        %v1036 = vadd.f32 %v787, %v652
        %v1037 = vadd.f32 %v787, %v653
        %v1038 = vadd.f32 %v787, %v654
        %v1039 = vadd.f32 %v787, %v655
        %v1040 = vadd.f32 %v787, %v656
        %v1041 = vadd.f32 %v791, %v657
        %v1042 = vadd.f32 %v791, %v658
        %v1043 = vadd.f32 %v791, %v659
        %v1044 = vadd.f32 %v791, %v660
        %v1045 = vadd.f32 %v791, %v661
        %v1046 = vadd.f32 %v791, %v662
        %v1047 = vadd.f32 %v791, %v663
        %v1048 = vadd.f32 %v791, %v664
        %s1049 = scalar_lea.vmem %s197, 1
        %v1050 = vld [vmem:[%s1049] ss:$2 sm:$0xff]
        %1051 = vset.pattern.permute.xlu0 1
        %1052 = vperm.xlu0 %1051, %v199
        %v1053 = vpop.permute.xlu0 %1052
        %1055 = vset.pattern.permute.xlu0 1
        %1056 = vperm.xlu0 %1055, %v200
        %v1057 = vpop.permute.xlu0 %1056
        %1059 = vset.pattern.permute.xlu0 1
        %1060 = vperm.xlu0 %1059, %v201
        %v1061 = vpop.permute.xlu0 %1060
        %1063 = vset.pattern.permute.xlu0 1
        %1064 = vperm.xlu0 %1063, %v202
        %v1065 = vpop.permute.xlu0 %1064
        %1067 = vset.pattern.permute.xlu0 1
        %1068 = vperm.xlu0 %1067, %v203
        %v1069 = vpop.permute.xlu0 %1068
        %1071 = vset.pattern.permute.xlu0 1
        %1072 = vperm.xlu0 %1071, %v204
        %v1073 = vpop.permute.xlu0 %1072
        %1075 = vset.pattern.permute.xlu0 1
        %1076 = vperm.xlu0 %1075, %v205
        %v1077 = vpop.permute.xlu0 %1076
        %1079 = vset.pattern.permute.xlu0 1
        %1080 = vperm.xlu0 %1079, %v206
        %v1081 = vpop.permute.xlu0 %1080
        %1083 = vset.pattern.permute.xlu0 1
        %1084 = vperm.xlu0 %1083, %v207
        %v1085 = vpop.permute.xlu0 %1084
        %1087 = vset.pattern.permute.xlu0 1
        %1088 = vperm.xlu0 %1087, %v208
        %v1089 = vpop.permute.xlu0 %1088
        %1091 = vset.pattern.permute.xlu0 1
        %1092 = vperm.xlu0 %1091, %v209
        %v1093 = vpop.permute.xlu0 %1092
        %1095 = vset.pattern.permute.xlu0 1
        %1096 = vperm.xlu0 %1095, %v210
        %v1097 = vpop.permute.xlu0 %1096
        %1099 = vset.pattern.permute.xlu0 1
        %1100 = vperm.xlu0 %1099, %v211
        %v1101 = vpop.permute.xlu0 %1100
        %1103 = vset.pattern.permute.xlu0 1
        %1104 = vperm.xlu0 %1103, %v212
        %v1105 = vpop.permute.xlu0 %1104
        %1107 = vset.pattern.permute.xlu0 1
        %1108 = vperm.xlu0 %1107, %v213
        %v1109 = vpop.permute.xlu0 %1108
        %1111 = vset.pattern.permute.xlu0 1
        %1112 = vperm.xlu0 %1111, %v214
        %v1113 = vpop.permute.xlu0 %1112
        %1115 = vset.pattern.permute.xlu0 1
        %1116 = vperm.xlu0 %1115, %v215
        %v1117 = vpop.permute.xlu0 %1116
        %1119 = vset.pattern.permute.xlu0 1
        %1120 = vperm.xlu0 %1119, %v216
        %v1121 = vpop.permute.xlu0 %1120
        %1123 = vset.pattern.permute.xlu0 1
        %1124 = vperm.xlu0 %1123, %v217
        %v1125 = vpop.permute.xlu0 %1124
        %1127 = vset.pattern.permute.xlu0 1
        %1128 = vperm.xlu0 %1127, %v218
        %v1129 = vpop.permute.xlu0 %1128
        %1131 = vset.pattern.permute.xlu0 1
        %1132 = vperm.xlu0 %1131, %v219
        %v1133 = vpop.permute.xlu0 %1132
        %1135 = vset.pattern.permute.xlu0 1
        %1136 = vperm.xlu0 %1135, %v220
        %v1137 = vpop.permute.xlu0 %1136
        %1139 = vset.pattern.permute.xlu0 1
        %1140 = vperm.xlu0 %1139, %v221
        %v1141 = vpop.permute.xlu0 %1140
        %1143 = vset.pattern.permute.xlu0 1
        %1144 = vperm.xlu0 %1143, %v222
        %v1145 = vpop.permute.xlu0 %1144
        %1147 = vset.pattern.permute.xlu0 1
        %1148 = vperm.xlu0 %1147, %v223
        %v1149 = vpop.permute.xlu0 %1148
        %1151 = vset.pattern.permute.xlu0 1
        %1152 = vperm.xlu0 %1151, %v224
        %v1153 = vpop.permute.xlu0 %1152
        %1155 = vset.pattern.permute.xlu0 1
        %1156 = vperm.xlu0 %1155, %v225
        %v1157 = vpop.permute.xlu0 %1156
        %1159 = vset.pattern.permute.xlu0 1
        %1160 = vperm.xlu0 %1159, %v226
        %v1161 = vpop.permute.xlu0 %1160
        %1163 = vset.pattern.permute.xlu0 1
        %1164 = vperm.xlu0 %1163, %v227
        %v1165 = vpop.permute.xlu0 %1164
        %1167 = vset.pattern.permute.xlu0 1
        %1168 = vperm.xlu0 %1167, %v228
        %v1169 = vpop.permute.xlu0 %1168
        %1171 = vset.pattern.permute.xlu0 1
        %1172 = vperm.xlu0 %1171, %v229
        %v1173 = vpop.permute.xlu0 %1172
        %1175 = vset.pattern.permute.xlu0 1
        %1176 = vperm.xlu0 %1175, %v230
        %v1177 = vpop.permute.xlu0 %1176
        %v1180 = vperm.slane %v1050, 0
        %v1181 = vperm.slane %v1050, 1
        %v1182 = vperm.slane %v1050, 2
        %v1183 = vperm.slane %v1050, 3
        %v1184 = vperm.slane %v1050, 4
        %v1185 = vperm.slane %v1050, 5
        %v1186 = vperm.slane %v1050, 6
        %v1187 = vperm.slane %v1050, 7
        %v1196 = vmul.f32 %v1053, %v1180
        %v1197 = vmul.f32 %v1053, %v1181
        %v1198 = vmul.f32 %v1053, %v1182
        %v1199 = vmul.f32 %v1053, %v1183
        %v1200 = vmul.f32 %v1053, %v1184
        %v1201 = vmul.f32 %v1053, %v1185
        %v1202 = vmul.f32 %v1053, %v1186
        %v1203 = vmul.f32 %v1053, %v1187
        %v1204 = vmul.f32 %v1057, %v1180
        %v1205 = vmul.f32 %v1057, %v1181
        %v1206 = vmul.f32 %v1057, %v1182
        %v1207 = vmul.f32 %v1057, %v1183
        %v1208 = vmul.f32 %v1057, %v1184
        %v1209 = vmul.f32 %v1057, %v1185
        %v1210 = vmul.f32 %v1057, %v1186
        %v1211 = vmul.f32 %v1057, %v1187
        %v1212 = vmul.f32 %v1061, %v1180
        %v1213 = vmul.f32 %v1061, %v1181
        %v1214 = vmul.f32 %v1061, %v1182
        %v1215 = vmul.f32 %v1061, %v1183
        %v1216 = vmul.f32 %v1061, %v1184
        %v1217 = vmul.f32 %v1061, %v1185
        %v1218 = vmul.f32 %v1061, %v1186
        %v1219 = vmul.f32 %v1061, %v1187
        %v1220 = vmul.f32 %v1065, %v1180
        %v1221 = vmul.f32 %v1065, %v1181
        %v1222 = vmul.f32 %v1065, %v1182
        %v1223 = vmul.f32 %v1065, %v1183
        %v1224 = vmul.f32 %v1065, %v1184
        %v1225 = vmul.f32 %v1065, %v1185
        %v1226 = vmul.f32 %v1065, %v1186
        %v1227 = vmul.f32 %v1065, %v1187
        %v1228 = vmul.f32 %v1069, %v1180
        %v1229 = vmul.f32 %v1069, %v1181
        %v1230 = vmul.f32 %v1069, %v1182
        %v1231 = vmul.f32 %v1069, %v1183
        %v1232 = vmul.f32 %v1069, %v1184
        %v1233 = vmul.f32 %v1069, %v1185
        %v1234 = vmul.f32 %v1069, %v1186
        %v1235 = vmul.f32 %v1069, %v1187
        %v1236 = vmul.f32 %v1073, %v1180
        %v1237 = vmul.f32 %v1073, %v1181
        %v1238 = vmul.f32 %v1073, %v1182
        %v1239 = vmul.f32 %v1073, %v1183
        %v1240 = vmul.f32 %v1073, %v1184
        %v1241 = vmul.f32 %v1073, %v1185
        %v1242 = vmul.f32 %v1073, %v1186
        %v1243 = vmul.f32 %v1073, %v1187
        %v1244 = vmul.f32 %v1077, %v1180
        %v1245 = vmul.f32 %v1077, %v1181
        %v1246 = vmul.f32 %v1077, %v1182
        %v1247 = vmul.f32 %v1077, %v1183
        %v1248 = vmul.f32 %v1077, %v1184
        %v1249 = vmul.f32 %v1077, %v1185
        %v1250 = vmul.f32 %v1077, %v1186
        %v1251 = vmul.f32 %v1077, %v1187
        %v1252 = vmul.f32 %v1081, %v1180
        %v1253 = vmul.f32 %v1081, %v1181
        %v1254 = vmul.f32 %v1081, %v1182
        %v1255 = vmul.f32 %v1081, %v1183
        %v1256 = vmul.f32 %v1081, %v1184
        %v1257 = vmul.f32 %v1081, %v1185
        %v1258 = vmul.f32 %v1081, %v1186
        %v1259 = vmul.f32 %v1081, %v1187
        %v1260 = vmul.f32 %v1085, %v1180
        %v1261 = vmul.f32 %v1085, %v1181
        %v1262 = vmul.f32 %v1085, %v1182
        %v1263 = vmul.f32 %v1085, %v1183
        %v1264 = vmul.f32 %v1085, %v1184
        %v1265 = vmul.f32 %v1085, %v1185
        %v1266 = vmul.f32 %v1085, %v1186
        %v1267 = vmul.f32 %v1085, %v1187
        %v1268 = vmul.f32 %v1089, %v1180
        %v1269 = vmul.f32 %v1089, %v1181
        %v1270 = vmul.f32 %v1089, %v1182
        %v1271 = vmul.f32 %v1089, %v1183
        %v1272 = vmul.f32 %v1089, %v1184
        %v1273 = vmul.f32 %v1089, %v1185
        %v1274 = vmul.f32 %v1089, %v1186
        %v1275 = vmul.f32 %v1089, %v1187
        %v1276 = vmul.f32 %v1093, %v1180
        %v1277 = vmul.f32 %v1093, %v1181
        %v1278 = vmul.f32 %v1093, %v1182
        %v1279 = vmul.f32 %v1093, %v1183
        %v1280 = vmul.f32 %v1093, %v1184
        %v1281 = vmul.f32 %v1093, %v1185
        %v1282 = vmul.f32 %v1093, %v1186
        %v1283 = vmul.f32 %v1093, %v1187
        %v1284 = vmul.f32 %v1097, %v1180
        %v1285 = vmul.f32 %v1097, %v1181
        %v1286 = vmul.f32 %v1097, %v1182
        %v1287 = vmul.f32 %v1097, %v1183
        %v1288 = vmul.f32 %v1097, %v1184
        %v1289 = vmul.f32 %v1097, %v1185
        %v1290 = vmul.f32 %v1097, %v1186
        %v1291 = vmul.f32 %v1097, %v1187
        %v1292 = vmul.f32 %v1101, %v1180
        %v1293 = vmul.f32 %v1101, %v1181
        %v1294 = vmul.f32 %v1101, %v1182
        %v1295 = vmul.f32 %v1101, %v1183
        %v1296 = vmul.f32 %v1101, %v1184
        %v1297 = vmul.f32 %v1101, %v1185
        %v1298 = vmul.f32 %v1101, %v1186
        %v1299 = vmul.f32 %v1101, %v1187
        %v1300 = vmul.f32 %v1105, %v1180
        %v1301 = vmul.f32 %v1105, %v1181
        %v1302 = vmul.f32 %v1105, %v1182
        %v1303 = vmul.f32 %v1105, %v1183
        %v1304 = vmul.f32 %v1105, %v1184
        %v1305 = vmul.f32 %v1105, %v1185
        %v1306 = vmul.f32 %v1105, %v1186
        %v1307 = vmul.f32 %v1105, %v1187
        %v1308 = vmul.f32 %v1109, %v1180
        %v1309 = vmul.f32 %v1109, %v1181
        %v1310 = vmul.f32 %v1109, %v1182
        %v1311 = vmul.f32 %v1109, %v1183
        %v1312 = vmul.f32 %v1109, %v1184
        %v1313 = vmul.f32 %v1109, %v1185
        %v1314 = vmul.f32 %v1109, %v1186
        %v1315 = vmul.f32 %v1109, %v1187
        %v1316 = vmul.f32 %v1113, %v1180
        %v1317 = vmul.f32 %v1113, %v1181
        %v1318 = vmul.f32 %v1113, %v1182
        %v1319 = vmul.f32 %v1113, %v1183
        %v1320 = vmul.f32 %v1113, %v1184
        %v1321 = vmul.f32 %v1113, %v1185
        %v1322 = vmul.f32 %v1113, %v1186
        %v1323 = vmul.f32 %v1113, %v1187
        %v1324 = vmul.f32 %v1117, %v1180
        %v1325 = vmul.f32 %v1117, %v1181
        %v1326 = vmul.f32 %v1117, %v1182
        %v1327 = vmul.f32 %v1117, %v1183
        %v1328 = vmul.f32 %v1117, %v1184
        %v1329 = vmul.f32 %v1117, %v1185
        %v1330 = vmul.f32 %v1117, %v1186
        %v1331 = vmul.f32 %v1117, %v1187
        %v1332 = vmul.f32 %v1121, %v1180
        %v1333 = vmul.f32 %v1121, %v1181
        %v1334 = vmul.f32 %v1121, %v1182
        %v1335 = vmul.f32 %v1121, %v1183
        %v1336 = vmul.f32 %v1121, %v1184
        %v1337 = vmul.f32 %v1121, %v1185
        %v1338 = vmul.f32 %v1121, %v1186
        %v1339 = vmul.f32 %v1121, %v1187
        %v1340 = vmul.f32 %v1125, %v1180
        %v1341 = vmul.f32 %v1125, %v1181
        %v1342 = vmul.f32 %v1125, %v1182
        %v1343 = vmul.f32 %v1125, %v1183
        %v1344 = vmul.f32 %v1125, %v1184
        %v1345 = vmul.f32 %v1125, %v1185
        %v1346 = vmul.f32 %v1125, %v1186
        %v1347 = vmul.f32 %v1125, %v1187
        %v1348 = vmul.f32 %v1129, %v1180
        %v1349 = vmul.f32 %v1129, %v1181
        %v1350 = vmul.f32 %v1129, %v1182
        %v1351 = vmul.f32 %v1129, %v1183
        %v1352 = vmul.f32 %v1129, %v1184
        %v1353 = vmul.f32 %v1129, %v1185
        %v1354 = vmul.f32 %v1129, %v1186
        %v1355 = vmul.f32 %v1129, %v1187
        %v1356 = vmul.f32 %v1133, %v1180
        %v1357 = vmul.f32 %v1133, %v1181
        %v1358 = vmul.f32 %v1133, %v1182
        %v1359 = vmul.f32 %v1133, %v1183
        %v1360 = vmul.f32 %v1133, %v1184
        %v1361 = vmul.f32 %v1133, %v1185
        %v1362 = vmul.f32 %v1133, %v1186
        %v1363 = vmul.f32 %v1133, %v1187
        %v1364 = vmul.f32 %v1137, %v1180
        %v1365 = vmul.f32 %v1137, %v1181
        %v1366 = vmul.f32 %v1137, %v1182
        %v1367 = vmul.f32 %v1137, %v1183
        %v1368 = vmul.f32 %v1137, %v1184
        %v1369 = vmul.f32 %v1137, %v1185
        %v1370 = vmul.f32 %v1137, %v1186
        %v1371 = vmul.f32 %v1137, %v1187
        %v1372 = vmul.f32 %v1141, %v1180
        %v1373 = vmul.f32 %v1141, %v1181
        %v1374 = vmul.f32 %v1141, %v1182
        %v1375 = vmul.f32 %v1141, %v1183
        %v1376 = vmul.f32 %v1141, %v1184
        %v1377 = vmul.f32 %v1141, %v1185
        %v1378 = vmul.f32 %v1141, %v1186
        %v1379 = vmul.f32 %v1141, %v1187
        %v1380 = vmul.f32 %v1145, %v1180
        %v1381 = vmul.f32 %v1145, %v1181
        %v1382 = vmul.f32 %v1145, %v1182
        %v1383 = vmul.f32 %v1145, %v1183
        %v1384 = vmul.f32 %v1145, %v1184
        %v1385 = vmul.f32 %v1145, %v1185
        %v1386 = vmul.f32 %v1145, %v1186
        %v1387 = vmul.f32 %v1145, %v1187
        %v1388 = vmul.f32 %v1149, %v1180
        %v1389 = vmul.f32 %v1149, %v1181
        %v1390 = vmul.f32 %v1149, %v1182
        %v1391 = vmul.f32 %v1149, %v1183
        %v1392 = vmul.f32 %v1149, %v1184
        %v1393 = vmul.f32 %v1149, %v1185
        %v1394 = vmul.f32 %v1149, %v1186
        %v1395 = vmul.f32 %v1149, %v1187
        %v1396 = vmul.f32 %v1153, %v1180
        %v1397 = vmul.f32 %v1153, %v1181
        %v1398 = vmul.f32 %v1153, %v1182
        %v1399 = vmul.f32 %v1153, %v1183
        %v1400 = vmul.f32 %v1153, %v1184
        %v1401 = vmul.f32 %v1153, %v1185
        %v1402 = vmul.f32 %v1153, %v1186
        %v1403 = vmul.f32 %v1153, %v1187
        %v1404 = vmul.f32 %v1157, %v1180
        %v1405 = vmul.f32 %v1157, %v1181
        %v1406 = vmul.f32 %v1157, %v1182
        %v1407 = vmul.f32 %v1157, %v1183
        %v1408 = vmul.f32 %v1157, %v1184
        %v1409 = vmul.f32 %v1157, %v1185
        %v1410 = vmul.f32 %v1157, %v1186
        %v1411 = vmul.f32 %v1157, %v1187
        %v1412 = vmul.f32 %v1161, %v1180
        %v1413 = vmul.f32 %v1161, %v1181
        %v1414 = vmul.f32 %v1161, %v1182
        %v1415 = vmul.f32 %v1161, %v1183
        %v1416 = vmul.f32 %v1161, %v1184
        %v1417 = vmul.f32 %v1161, %v1185
        %v1418 = vmul.f32 %v1161, %v1186
        %v1419 = vmul.f32 %v1161, %v1187
        %v1420 = vmul.f32 %v1165, %v1180
        %v1421 = vmul.f32 %v1165, %v1181
        %v1422 = vmul.f32 %v1165, %v1182
        %v1423 = vmul.f32 %v1165, %v1183
        %v1424 = vmul.f32 %v1165, %v1184
        %v1425 = vmul.f32 %v1165, %v1185
        %v1426 = vmul.f32 %v1165, %v1186
        %v1427 = vmul.f32 %v1165, %v1187
        %v1428 = vmul.f32 %v1169, %v1180
        %v1429 = vmul.f32 %v1169, %v1181
        %v1430 = vmul.f32 %v1169, %v1182
        %v1431 = vmul.f32 %v1169, %v1183
        %v1432 = vmul.f32 %v1169, %v1184
        %v1433 = vmul.f32 %v1169, %v1185
        %v1434 = vmul.f32 %v1169, %v1186
        %v1435 = vmul.f32 %v1169, %v1187
        %v1436 = vmul.f32 %v1173, %v1180
        %v1437 = vmul.f32 %v1173, %v1181
        %v1438 = vmul.f32 %v1173, %v1182
        %v1439 = vmul.f32 %v1173, %v1183
        %v1440 = vmul.f32 %v1173, %v1184
        %v1441 = vmul.f32 %v1173, %v1185
        %v1442 = vmul.f32 %v1173, %v1186
        %v1443 = vmul.f32 %v1173, %v1187
        %v1444 = vmul.f32 %v1177, %v1180
        %v1445 = vmul.f32 %v1177, %v1181
        %v1446 = vmul.f32 %v1177, %v1182
        %v1447 = vmul.f32 %v1177, %v1183
        %v1448 = vmul.f32 %v1177, %v1184
        %v1449 = vmul.f32 %v1177, %v1185
        %v1450 = vmul.f32 %v1177, %v1186
        %v1451 = vmul.f32 %v1177, %v1187
        %v1452 = vadd.f32 %v793, %v1196
        %v1453 = vadd.f32 %v794, %v1197
        %v1454 = vadd.f32 %v795, %v1198
        %v1455 = vadd.f32 %v796, %v1199
        %v1456 = vadd.f32 %v797, %v1200
        %v1457 = vadd.f32 %v798, %v1201
        %v1458 = vadd.f32 %v799, %v1202
        %v1459 = vadd.f32 %v800, %v1203
        %v1460 = vadd.f32 %v801, %v1204
        %v1461 = vadd.f32 %v802, %v1205
        %v1462 = vadd.f32 %v803, %v1206
        %v1463 = vadd.f32 %v804, %v1207
        %v1464 = vadd.f32 %v805, %v1208
        %v1465 = vadd.f32 %v806, %v1209
        %v1466 = vadd.f32 %v807, %v1210
        %v1467 = vadd.f32 %v808, %v1211
        %v1468 = vadd.f32 %v809, %v1212
        %v1469 = vadd.f32 %v810, %v1213
        %v1470 = vadd.f32 %v811, %v1214
        %v1471 = vadd.f32 %v812, %v1215
        %v1472 = vadd.f32 %v813, %v1216
        %v1473 = vadd.f32 %v814, %v1217
        %v1474 = vadd.f32 %v815, %v1218
        %v1475 = vadd.f32 %v816, %v1219
        %v1476 = vadd.f32 %v817, %v1220
        %v1477 = vadd.f32 %v818, %v1221
        %v1478 = vadd.f32 %v819, %v1222
        %v1479 = vadd.f32 %v820, %v1223
        %v1480 = vadd.f32 %v821, %v1224
        %v1481 = vadd.f32 %v822, %v1225
        %v1482 = vadd.f32 %v823, %v1226
        %v1483 = vadd.f32 %v824, %v1227
        %v1484 = vadd.f32 %v825, %v1228
        %v1485 = vadd.f32 %v826, %v1229
        %v1486 = vadd.f32 %v827, %v1230
        %v1487 = vadd.f32 %v828, %v1231
        %v1488 = vadd.f32 %v829, %v1232
        %v1489 = vadd.f32 %v830, %v1233
        %v1490 = vadd.f32 %v831, %v1234
        %v1491 = vadd.f32 %v832, %v1235
        %v1492 = vadd.f32 %v833, %v1236
        %v1493 = vadd.f32 %v834, %v1237
        %v1494 = vadd.f32 %v835, %v1238
        %v1495 = vadd.f32 %v836, %v1239
        %v1496 = vadd.f32 %v837, %v1240
        %v1497 = vadd.f32 %v838, %v1241
        %v1498 = vadd.f32 %v839, %v1242
        %v1499 = vadd.f32 %v840, %v1243
        %v1500 = vadd.f32 %v841, %v1244
        %v1501 = vadd.f32 %v842, %v1245
        %v1502 = vadd.f32 %v843, %v1246
        %v1503 = vadd.f32 %v844, %v1247
        %v1504 = vadd.f32 %v845, %v1248
        %v1505 = vadd.f32 %v846, %v1249
        %v1506 = vadd.f32 %v847, %v1250
        %v1507 = vadd.f32 %v848, %v1251
        %v1508 = vadd.f32 %v849, %v1252
        %v1509 = vadd.f32 %v850, %v1253
        %v1510 = vadd.f32 %v851, %v1254
        %v1511 = vadd.f32 %v852, %v1255
        %v1512 = vadd.f32 %v853, %v1256
        %v1513 = vadd.f32 %v854, %v1257
        %v1514 = vadd.f32 %v855, %v1258
        %v1515 = vadd.f32 %v856, %v1259
        %v1516 = vadd.f32 %v857, %v1260
        %v1517 = vadd.f32 %v858, %v1261
        %v1518 = vadd.f32 %v859, %v1262
        %v1519 = vadd.f32 %v860, %v1263
        %v1520 = vadd.f32 %v861, %v1264
        %v1521 = vadd.f32 %v862, %v1265
        %v1522 = vadd.f32 %v863, %v1266
        %v1523 = vadd.f32 %v864, %v1267
        %v1524 = vadd.f32 %v865, %v1268
        %v1525 = vadd.f32 %v866, %v1269
        %v1526 = vadd.f32 %v867, %v1270
        %v1527 = vadd.f32 %v868, %v1271
        %v1528 = vadd.f32 %v869, %v1272
        %v1529 = vadd.f32 %v870, %v1273
        %v1530 = vadd.f32 %v871, %v1274
        %v1531 = vadd.f32 %v872, %v1275
        %v1532 = vadd.f32 %v873, %v1276
        %v1533 = vadd.f32 %v874, %v1277
        %v1534 = vadd.f32 %v875, %v1278
        %v1535 = vadd.f32 %v876, %v1279
        %v1536 = vadd.f32 %v877, %v1280
        %v1537 = vadd.f32 %v878, %v1281
        %v1538 = vadd.f32 %v879, %v1282
        %v1539 = vadd.f32 %v880, %v1283
        %v1540 = vadd.f32 %v881, %v1284
        %v1541 = vadd.f32 %v882, %v1285
        %v1542 = vadd.f32 %v883, %v1286
        %v1543 = vadd.f32 %v884, %v1287
        %v1544 = vadd.f32 %v885, %v1288
        %v1545 = vadd.f32 %v886, %v1289
        %v1546 = vadd.f32 %v887, %v1290
        %v1547 = vadd.f32 %v888, %v1291
        %v1548 = vadd.f32 %v889, %v1292
        %v1549 = vadd.f32 %v890, %v1293
        %v1550 = vadd.f32 %v891, %v1294
        %v1551 = vadd.f32 %v892, %v1295
        %v1552 = vadd.f32 %v893, %v1296
        %v1553 = vadd.f32 %v894, %v1297
        %v1554 = vadd.f32 %v895, %v1298
        %v1555 = vadd.f32 %v896, %v1299
        %v1556 = vadd.f32 %v897, %v1300
        %v1557 = vadd.f32 %v898, %v1301
        %v1558 = vadd.f32 %v899, %v1302
        %v1559 = vadd.f32 %v900, %v1303
        %v1560 = vadd.f32 %v901, %v1304
        %v1561 = vadd.f32 %v902, %v1305
        %v1562 = vadd.f32 %v903, %v1306
        %v1563 = vadd.f32 %v904, %v1307
        %v1564 = vadd.f32 %v905, %v1308
        %v1565 = vadd.f32 %v906, %v1309
        %v1566 = vadd.f32 %v907, %v1310
        %v1567 = vadd.f32 %v908, %v1311
        %v1568 = vadd.f32 %v909, %v1312
        %v1569 = vadd.f32 %v910, %v1313
        %v1570 = vadd.f32 %v911, %v1314
        %v1571 = vadd.f32 %v912, %v1315
        %v1572 = vadd.f32 %v913, %v1316
        %v1573 = vadd.f32 %v914, %v1317
        %v1574 = vadd.f32 %v915, %v1318
        %v1575 = vadd.f32 %v916, %v1319
        %v1576 = vadd.f32 %v917, %v1320
        %v1577 = vadd.f32 %v918, %v1321
        %v1578 = vadd.f32 %v919, %v1322
        %v1579 = vadd.f32 %v920, %v1323
        %v1580 = vadd.f32 %v921, %v1324
        %v1581 = vadd.f32 %v922, %v1325
        %v1582 = vadd.f32 %v923, %v1326
        %v1583 = vadd.f32 %v924, %v1327
        %v1584 = vadd.f32 %v925, %v1328
        %v1585 = vadd.f32 %v926, %v1329
        %v1586 = vadd.f32 %v927, %v1330
        %v1587 = vadd.f32 %v928, %v1331
        %v1588 = vadd.f32 %v929, %v1332
        %v1589 = vadd.f32 %v930, %v1333
        %v1590 = vadd.f32 %v931, %v1334
        %v1591 = vadd.f32 %v932, %v1335
        %v1592 = vadd.f32 %v933, %v1336
        %v1593 = vadd.f32 %v934, %v1337
        %v1594 = vadd.f32 %v935, %v1338
        %v1595 = vadd.f32 %v936, %v1339
        %v1596 = vadd.f32 %v937, %v1340
        %v1597 = vadd.f32 %v938, %v1341
        %v1598 = vadd.f32 %v939, %v1342
        %v1599 = vadd.f32 %v940, %v1343
        %v1600 = vadd.f32 %v941, %v1344
        %v1601 = vadd.f32 %v942, %v1345
        %v1602 = vadd.f32 %v943, %v1346
        %v1603 = vadd.f32 %v944, %v1347
        %v1604 = vadd.f32 %v945, %v1348
        %v1605 = vadd.f32 %v946, %v1349
        %v1606 = vadd.f32 %v947, %v1350
        %v1607 = vadd.f32 %v948, %v1351
        %v1608 = vadd.f32 %v949, %v1352
        %v1609 = vadd.f32 %v950, %v1353
        %v1610 = vadd.f32 %v951, %v1354
        %v1611 = vadd.f32 %v952, %v1355
        %v1612 = vadd.f32 %v953, %v1356
        %v1613 = vadd.f32 %v954, %v1357
        %v1614 = vadd.f32 %v955, %v1358
        %v1615 = vadd.f32 %v956, %v1359
        %v1616 = vadd.f32 %v957, %v1360
        %v1617 = vadd.f32 %v958, %v1361
        %v1618 = vadd.f32 %v959, %v1362
        %v1619 = vadd.f32 %v960, %v1363
        %v1620 = vadd.f32 %v961, %v1364
        %v1621 = vadd.f32 %v962, %v1365
        %v1622 = vadd.f32 %v963, %v1366
        %v1623 = vadd.f32 %v964, %v1367
        %v1624 = vadd.f32 %v965, %v1368
        %v1625 = vadd.f32 %v966, %v1369
        %v1626 = vadd.f32 %v967, %v1370
        %v1627 = vadd.f32 %v968, %v1371
        %v1628 = vadd.f32 %v969, %v1372
        %v1629 = vadd.f32 %v970, %v1373
        %v1630 = vadd.f32 %v971, %v1374
        %v1631 = vadd.f32 %v972, %v1375
        %v1632 = vadd.f32 %v973, %v1376
        %v1633 = vadd.f32 %v974, %v1377
        %v1634 = vadd.f32 %v975, %v1378
        %v1635 = vadd.f32 %v976, %v1379
        %v1636 = vadd.f32 %v977, %v1380
        %v1637 = vadd.f32 %v978, %v1381
        %v1638 = vadd.f32 %v979, %v1382
        %v1639 = vadd.f32 %v980, %v1383
        %v1640 = vadd.f32 %v981, %v1384
        %v1641 = vadd.f32 %v982, %v1385
        %v1642 = vadd.f32 %v983, %v1386
        %v1643 = vadd.f32 %v984, %v1387
        %v1644 = vadd.f32 %v985, %v1388
        %v1645 = vadd.f32 %v986, %v1389
        %v1646 = vadd.f32 %v987, %v1390
        %v1647 = vadd.f32 %v988, %v1391
        %v1648 = vadd.f32 %v989, %v1392
        %v1649 = vadd.f32 %v990, %v1393
        %v1650 = vadd.f32 %v991, %v1394
        %v1651 = vadd.f32 %v992, %v1395
        %v1652 = vadd.f32 %v993, %v1396
        %v1653 = vadd.f32 %v994, %v1397
        %v1654 = vadd.f32 %v995, %v1398
        %v1655 = vadd.f32 %v996, %v1399
        %v1656 = vadd.f32 %v997, %v1400
        %v1657 = vadd.f32 %v998, %v1401
        %v1658 = vadd.f32 %v999, %v1402
        %v1659 = vadd.f32 %v1000, %v1403
        %v1660 = vadd.f32 %v1001, %v1404
        %v1661 = vadd.f32 %v1002, %v1405
        %v1662 = vadd.f32 %v1003, %v1406
        %v1663 = vadd.f32 %v1004, %v1407
        %v1664 = vadd.f32 %v1005, %v1408
        %v1665 = vadd.f32 %v1006, %v1409
        %v1666 = vadd.f32 %v1007, %v1410
        %v1667 = vadd.f32 %v1008, %v1411
        %v1668 = vadd.f32 %v1009, %v1412
        %v1669 = vadd.f32 %v1010, %v1413
        %v1670 = vadd.f32 %v1011, %v1414
        %v1671 = vadd.f32 %v1012, %v1415
        %v1672 = vadd.f32 %v1013, %v1416
        %v1673 = vadd.f32 %v1014, %v1417
        %v1674 = vadd.f32 %v1015, %v1418
        %v1675 = vadd.f32 %v1016, %v1419
        %v1676 = vadd.f32 %v1017, %v1420
        %v1677 = vadd.f32 %v1018, %v1421
        %v1678 = vadd.f32 %v1019, %v1422
        %v1679 = vadd.f32 %v1020, %v1423
        %v1680 = vadd.f32 %v1021, %v1424
        %v1681 = vadd.f32 %v1022, %v1425
        %v1682 = vadd.f32 %v1023, %v1426
        %v1683 = vadd.f32 %v1024, %v1427
        %v1684 = vadd.f32 %v1025, %v1428
        %v1685 = vadd.f32 %v1026, %v1429
        %v1686 = vadd.f32 %v1027, %v1430
        %v1687 = vadd.f32 %v1028, %v1431
        %v1688 = vadd.f32 %v1029, %v1432
        %v1689 = vadd.f32 %v1030, %v1433
        %v1690 = vadd.f32 %v1031, %v1434
        %v1691 = vadd.f32 %v1032, %v1435
        %v1692 = vadd.f32 %v1033, %v1436
        %v1693 = vadd.f32 %v1034, %v1437
        %v1694 = vadd.f32 %v1035, %v1438
        %v1695 = vadd.f32 %v1036, %v1439
        %v1696 = vadd.f32 %v1037, %v1440
        %v1697 = vadd.f32 %v1038, %v1441
        %v1698 = vadd.f32 %v1039, %v1442
        %v1699 = vadd.f32 %v1040, %v1443
        %v1700 = vadd.f32 %v1041, %v1444
        %v1701 = vadd.f32 %v1042, %v1445
        %v1702 = vadd.f32 %v1043, %v1446
        %v1703 = vadd.f32 %v1044, %v1447
        %v1704 = vadd.f32 %v1045, %v1448
        %v1705 = vadd.f32 %v1046, %v1449
        %v1706 = vadd.f32 %v1047, %v1450
        %v1707 = vadd.f32 %v1048, %v1451
        %v1708 = vtanh.pop %v1452
        %v1709 = vtanh.pop %v1453
        %v1710 = vtanh.pop %v1454
        %v1711 = vtanh.pop %v1455
        %v1712 = vtanh.pop %v1456
        %v1713 = vtanh.pop %v1457
        %v1714 = vtanh.pop %v1458
        %v1715 = vtanh.pop %v1459
        %v1716 = vtanh.pop %v1460
        %v1717 = vtanh.pop %v1461
        %v1718 = vtanh.pop %v1462
        %v1719 = vtanh.pop %v1463
        %v1720 = vtanh.pop %v1464
        %v1721 = vtanh.pop %v1465
        %v1722 = vtanh.pop %v1466
        %v1723 = vtanh.pop %v1467
        %v1724 = vtanh.pop %v1468
        %v1725 = vtanh.pop %v1469
        %v1726 = vtanh.pop %v1470
        %v1727 = vtanh.pop %v1471
        %v1728 = vtanh.pop %v1472
        %v1729 = vtanh.pop %v1473
        %v1730 = vtanh.pop %v1474
        %v1731 = vtanh.pop %v1475
        %v1732 = vtanh.pop %v1476
        %v1733 = vtanh.pop %v1477
        %v1734 = vtanh.pop %v1478
        %v1735 = vtanh.pop %v1479
        %v1736 = vtanh.pop %v1480
        %v1737 = vtanh.pop %v1481
        %v1738 = vtanh.pop %v1482
        %v1739 = vtanh.pop %v1483
        %v1740 = vtanh.pop %v1484
        %v1741 = vtanh.pop %v1485
        %v1742 = vtanh.pop %v1486
        %v1743 = vtanh.pop %v1487
        %v1744 = vtanh.pop %v1488
        %v1745 = vtanh.pop %v1489
        %v1746 = vtanh.pop %v1490
        %v1747 = vtanh.pop %v1491
        %v1748 = vtanh.pop %v1492
        %v1749 = vtanh.pop %v1493
        %v1750 = vtanh.pop %v1494
        %v1751 = vtanh.pop %v1495
        %v1752 = vtanh.pop %v1496
        %v1753 = vtanh.pop %v1497
        %v1754 = vtanh.pop %v1498
        %v1755 = vtanh.pop %v1499
        %v1756 = vtanh.pop %v1500
        %v1757 = vtanh.pop %v1501
        %v1758 = vtanh.pop %v1502
        %v1759 = vtanh.pop %v1503
        %v1760 = vtanh.pop %v1504
        %v1761 = vtanh.pop %v1505
        %v1762 = vtanh.pop %v1506
        %v1763 = vtanh.pop %v1507
        %v1764 = vtanh.pop %v1508
        %v1765 = vtanh.pop %v1509
        %v1766 = vtanh.pop %v1510
        %v1767 = vtanh.pop %v1511
        %v1768 = vtanh.pop %v1512
        %v1769 = vtanh.pop %v1513
        %v1770 = vtanh.pop %v1514
        %v1771 = vtanh.pop %v1515
        %v1772 = vtanh.pop %v1516
        %v1773 = vtanh.pop %v1517
        %v1774 = vtanh.pop %v1518
        %v1775 = vtanh.pop %v1519
        %v1776 = vtanh.pop %v1520
        %v1777 = vtanh.pop %v1521
        %v1778 = vtanh.pop %v1522
        %v1779 = vtanh.pop %v1523
        %v1780 = vtanh.pop %v1524
        %v1781 = vtanh.pop %v1525
        %v1782 = vtanh.pop %v1526
        %v1783 = vtanh.pop %v1527
        %v1784 = vtanh.pop %v1528
        %v1785 = vtanh.pop %v1529
        %v1786 = vtanh.pop %v1530
        %v1787 = vtanh.pop %v1531
        %v1788 = vtanh.pop %v1532
        %v1789 = vtanh.pop %v1533
        %v1790 = vtanh.pop %v1534
        %v1791 = vtanh.pop %v1535
        %v1792 = vtanh.pop %v1536
        %v1793 = vtanh.pop %v1537
        %v1794 = vtanh.pop %v1538
        %v1795 = vtanh.pop %v1539
        %v1796 = vtanh.pop %v1540
        %v1797 = vtanh.pop %v1541
        %v1798 = vtanh.pop %v1542
        %v1799 = vtanh.pop %v1543
        %v1800 = vtanh.pop %v1544
        %v1801 = vtanh.pop %v1545
        %v1802 = vtanh.pop %v1546
        %v1803 = vtanh.pop %v1547
        %v1804 = vtanh.pop %v1548
        %v1805 = vtanh.pop %v1549
        %v1806 = vtanh.pop %v1550
        %v1807 = vtanh.pop %v1551
        %v1808 = vtanh.pop %v1552
        %v1809 = vtanh.pop %v1553
        %v1810 = vtanh.pop %v1554
        %v1811 = vtanh.pop %v1555
        %v1812 = vtanh.pop %v1556
        %v1813 = vtanh.pop %v1557
        %v1814 = vtanh.pop %v1558
        %v1815 = vtanh.pop %v1559
        %v1816 = vtanh.pop %v1560
        %v1817 = vtanh.pop %v1561
        %v1818 = vtanh.pop %v1562
        %v1819 = vtanh.pop %v1563
        %v1820 = vtanh.pop %v1564
        %v1821 = vtanh.pop %v1565
        %v1822 = vtanh.pop %v1566
        %v1823 = vtanh.pop %v1567
        %v1824 = vtanh.pop %v1568
        %v1825 = vtanh.pop %v1569
        %v1826 = vtanh.pop %v1570
        %v1827 = vtanh.pop %v1571
        %v1828 = vtanh.pop %v1572
        %v1829 = vtanh.pop %v1573
        %v1830 = vtanh.pop %v1574
        %v1831 = vtanh.pop %v1575
        %v1832 = vtanh.pop %v1576
        %v1833 = vtanh.pop %v1577
        %v1834 = vtanh.pop %v1578
        %v1835 = vtanh.pop %v1579
        %v1836 = vtanh.pop %v1580
        %v1837 = vtanh.pop %v1581
        %v1838 = vtanh.pop %v1582
        %v1839 = vtanh.pop %v1583
        %v1840 = vtanh.pop %v1584
        %v1841 = vtanh.pop %v1585
        %v1842 = vtanh.pop %v1586
        %v1843 = vtanh.pop %v1587
        %v1844 = vtanh.pop %v1588
        %v1845 = vtanh.pop %v1589
        %v1846 = vtanh.pop %v1590
        %v1847 = vtanh.pop %v1591
        %v1848 = vtanh.pop %v1592
        %v1849 = vtanh.pop %v1593
        %v1850 = vtanh.pop %v1594
        %v1851 = vtanh.pop %v1595
        %v1852 = vtanh.pop %v1596
        %v1853 = vtanh.pop %v1597
        %v1854 = vtanh.pop %v1598
        %v1855 = vtanh.pop %v1599
        %v1856 = vtanh.pop %v1600
        %v1857 = vtanh.pop %v1601
        %v1858 = vtanh.pop %v1602
        %v1859 = vtanh.pop %v1603
        %v1860 = vtanh.pop %v1604
        %v1861 = vtanh.pop %v1605
        %v1862 = vtanh.pop %v1606
        %v1863 = vtanh.pop %v1607
        %v1864 = vtanh.pop %v1608
        %v1865 = vtanh.pop %v1609
        %v1866 = vtanh.pop %v1610
        %v1867 = vtanh.pop %v1611
        %v1868 = vtanh.pop %v1612
        %v1869 = vtanh.pop %v1613
        %v1870 = vtanh.pop %v1614
        %v1871 = vtanh.pop %v1615
        %v1872 = vtanh.pop %v1616
        %v1873 = vtanh.pop %v1617
        %v1874 = vtanh.pop %v1618
        %v1875 = vtanh.pop %v1619
        %v1876 = vtanh.pop %v1620
        %v1877 = vtanh.pop %v1621
        %v1878 = vtanh.pop %v1622
        %v1879 = vtanh.pop %v1623
        %v1880 = vtanh.pop %v1624
        %v1881 = vtanh.pop %v1625
        %v1882 = vtanh.pop %v1626
        %v1883 = vtanh.pop %v1627
        %v1884 = vtanh.pop %v1628
        %v1885 = vtanh.pop %v1629
        %v1886 = vtanh.pop %v1630
        %v1887 = vtanh.pop %v1631
        %v1888 = vtanh.pop %v1632
        %v1889 = vtanh.pop %v1633
        %v1890 = vtanh.pop %v1634
        %v1891 = vtanh.pop %v1635
        %v1892 = vtanh.pop %v1636
        %v1893 = vtanh.pop %v1637
        %v1894 = vtanh.pop %v1638
        %v1895 = vtanh.pop %v1639
        %v1896 = vtanh.pop %v1640
        %v1897 = vtanh.pop %v1641
        %v1898 = vtanh.pop %v1642
        %v1899 = vtanh.pop %v1643
        %v1900 = vtanh.pop %v1644
        %v1901 = vtanh.pop %v1645
        %v1902 = vtanh.pop %v1646
        %v1903 = vtanh.pop %v1647
        %v1904 = vtanh.pop %v1648
        %v1905 = vtanh.pop %v1649
        %v1906 = vtanh.pop %v1650
        %v1907 = vtanh.pop %v1651
        %v1908 = vtanh.pop %v1652
        %v1909 = vtanh.pop %v1653
        %v1910 = vtanh.pop %v1654
        %v1911 = vtanh.pop %v1655
        %v1912 = vtanh.pop %v1656
        %v1913 = vtanh.pop %v1657
        %v1914 = vtanh.pop %v1658
        %v1915 = vtanh.pop %v1659
        %v1916 = vtanh.pop %v1660
        %v1917 = vtanh.pop %v1661
        %v1918 = vtanh.pop %v1662
        %v1919 = vtanh.pop %v1663
        %v1920 = vtanh.pop %v1664
        %v1921 = vtanh.pop %v1665
        %v1922 = vtanh.pop %v1666
        %v1923 = vtanh.pop %v1667
        %v1924 = vtanh.pop %v1668
        %v1925 = vtanh.pop %v1669
        %v1926 = vtanh.pop %v1670
        %v1927 = vtanh.pop %v1671
        %v1928 = vtanh.pop %v1672
        %v1929 = vtanh.pop %v1673
        %v1930 = vtanh.pop %v1674
        %v1931 = vtanh.pop %v1675
        %v1932 = vtanh.pop %v1676
        %v1933 = vtanh.pop %v1677
        %v1934 = vtanh.pop %v1678
        %v1935 = vtanh.pop %v1679
        %v1936 = vtanh.pop %v1680
        %v1937 = vtanh.pop %v1681
        %v1938 = vtanh.pop %v1682
        %v1939 = vtanh.pop %v1683
        %v1940 = vtanh.pop %v1684
        %v1941 = vtanh.pop %v1685
        %v1942 = vtanh.pop %v1686
        %v1943 = vtanh.pop %v1687
        %v1944 = vtanh.pop %v1688
        %v1945 = vtanh.pop %v1689
        %v1946 = vtanh.pop %v1690
        %v1947 = vtanh.pop %v1691
        %v1948 = vtanh.pop %v1692
        %v1949 = vtanh.pop %v1693
        %v1950 = vtanh.pop %v1694
        %v1951 = vtanh.pop %v1695
        %v1952 = vtanh.pop %v1696
        %v1953 = vtanh.pop %v1697
        %v1954 = vtanh.pop %v1698
        %v1955 = vtanh.pop %v1699
        %v1956 = vtanh.pop %v1700
        %v1957 = vtanh.pop %v1701
        %v1958 = vtanh.pop %v1702
        %v1959 = vtanh.pop %v1703
        %v1960 = vtanh.pop %v1704
        %v1961 = vtanh.pop %v1705
        %v1962 = vtanh.pop %v1706
        %v1963 = vtanh.pop %v1707
        %v1964 = vld [vmem:[%s2] sm:$0xff]
        %v1965 = vld [vmem:[%s2 + $0x8] sm:$0xff]
        %1966 = vmatpush.msra.mxu0 %v1828
        %1967 = vmatpush.msra.mxu0 %v1820
        %1968 = vmatpush.msra.mxu0 %v1812
        %1969 = vmatpush.msra.mxu0 %v1804
        %1970 = vmatpush.msra.mxu0 %v1796
        %1971 = vmatpush.msra.mxu0 %v1788
        %1972 = vmatpush.msra.mxu0 %v1780
        %1973 = vmatpush.msra.mxu0 %v1772
        %1974 = vmatpush.msra.mxu0 %v1764
        %1975 = vmatpush.msra.mxu0 %v1756
        %1976 = vmatpush.msra.mxu0 %v1748
        %1977 = vmatpush.msra.mxu0 %v1740
        %1978 = vmatpush.msra.mxu0 %v1732
        %1979 = vmatpush.msra.mxu0 %v1724
        %1980 = vmatpush.msra.mxu0 %v1716
        %1981 = vmatpush.msra.mxu0 %v1708
        %1982 = vmatmul.f32.gmra.mxu0 %v1964
        %v1983 = vpop.f32.mrf.mxu0
        %v1984 = vadd.f32 0.0, %v1983
        %1985 = vdwg.mxu0
        %1986 = vmatpush.msra.mxu0 %v1956
        %1987 = vmatpush.msra.mxu0 %v1948
        %1988 = vmatpush.msra.mxu0 %v1940
        %1989 = vmatpush.msra.mxu0 %v1932
        %1990 = vmatpush.msra.mxu0 %v1924
        %1991 = vmatpush.msra.mxu0 %v1916
        %1992 = vmatpush.msra.mxu0 %v1908
        %1993 = vmatpush.msra.mxu0 %v1900
        %1994 = vmatpush.msra.mxu0 %v1892
        %1995 = vmatpush.msra.mxu0 %v1884
        %1996 = vmatpush.msra.mxu0 %v1876
        %1997 = vmatpush.msra.mxu0 %v1868
        %1998 = vmatpush.msra.mxu0 %v1860
        %1999 = vmatpush.msra.mxu0 %v1852
        %2000 = vmatpush.msra.mxu0 %v1844
        %2001 = vmatpush.msra.mxu0 %v1836
        %2002 = vmatmul.f32.gmra.mxu0 %v1965
        %v2003 = vpop.f32.mrf.mxu0
        %v2004 = vadd.f32 %v1984, %v2003
        %2005 = vdwg.mxu0
        %2006 = vmatpush.msra.mxu0 %v1829
        %2007 = vmatpush.msra.mxu0 %v1821
        %2008 = vmatpush.msra.mxu0 %v1813
        %2009 = vmatpush.msra.mxu0 %v1805
        %2010 = vmatpush.msra.mxu0 %v1797
        %2011 = vmatpush.msra.mxu0 %v1789
        %2012 = vmatpush.msra.mxu0 %v1781
        %2013 = vmatpush.msra.mxu0 %v1773
        %2014 = vmatpush.msra.mxu0 %v1765
        %2015 = vmatpush.msra.mxu0 %v1757
        %2016 = vmatpush.msra.mxu0 %v1749
        %2017 = vmatpush.msra.mxu0 %v1741
        %2018 = vmatpush.msra.mxu0 %v1733
        %2019 = vmatpush.msra.mxu0 %v1725
        %2020 = vmatpush.msra.mxu0 %v1717
        %2021 = vmatpush.msra.mxu0 %v1709
        %2022 = vmatmul.f32.gmra.mxu0 %v1964
        %v2023 = vpop.f32.mrf.mxu0
        %v2024 = vadd.f32 0.0, %v2023
        %2025 = vdwg.mxu0
        %2026 = vmatpush.msra.mxu0 %v1957
        %2027 = vmatpush.msra.mxu0 %v1949
        %2028 = vmatpush.msra.mxu0 %v1941
        %2029 = vmatpush.msra.mxu0 %v1933
        %2030 = vmatpush.msra.mxu0 %v1925
        %2031 = vmatpush.msra.mxu0 %v1917
        %2032 = vmatpush.msra.mxu0 %v1909
        %2033 = vmatpush.msra.mxu0 %v1901
        %2034 = vmatpush.msra.mxu0 %v1893
        %2035 = vmatpush.msra.mxu0 %v1885
        %2036 = vmatpush.msra.mxu0 %v1877
        %2037 = vmatpush.msra.mxu0 %v1869
        %2038 = vmatpush.msra.mxu0 %v1861
        %2039 = vmatpush.msra.mxu0 %v1853
        %2040 = vmatpush.msra.mxu0 %v1845
        %2041 = vmatpush.msra.mxu0 %v1837
        %2042 = vmatmul.f32.gmra.mxu0 %v1965
        %v2043 = vpop.f32.mrf.mxu0
        %v2044 = vadd.f32 %v2024, %v2043
        %2045 = vdwg.mxu0
        %2046 = vmatpush.msra.mxu0 %v1830
        %2047 = vmatpush.msra.mxu0 %v1822
        %2048 = vmatpush.msra.mxu0 %v1814
        %2049 = vmatpush.msra.mxu0 %v1806
        %2050 = vmatpush.msra.mxu0 %v1798
        %2051 = vmatpush.msra.mxu0 %v1790
        %2052 = vmatpush.msra.mxu0 %v1782
        %2053 = vmatpush.msra.mxu0 %v1774
        %2054 = vmatpush.msra.mxu0 %v1766
        %2055 = vmatpush.msra.mxu0 %v1758
        %2056 = vmatpush.msra.mxu0 %v1750
        %2057 = vmatpush.msra.mxu0 %v1742
        %2058 = vmatpush.msra.mxu0 %v1734
        %2059 = vmatpush.msra.mxu0 %v1726
        %2060 = vmatpush.msra.mxu0 %v1718
        %2061 = vmatpush.msra.mxu0 %v1710
        %2062 = vmatmul.f32.gmra.mxu0 %v1964
        %v2063 = vpop.f32.mrf.mxu0
        %v2064 = vadd.f32 0.0, %v2063
        %2065 = vdwg.mxu0
        %2066 = vmatpush.msra.mxu0 %v1958
        %2067 = vmatpush.msra.mxu0 %v1950
        %2068 = vmatpush.msra.mxu0 %v1942
        %2069 = vmatpush.msra.mxu0 %v1934
        %2070 = vmatpush.msra.mxu0 %v1926
        %2071 = vmatpush.msra.mxu0 %v1918
        %2072 = vmatpush.msra.mxu0 %v1910
        %2073 = vmatpush.msra.mxu0 %v1902
        %2074 = vmatpush.msra.mxu0 %v1894
        %2075 = vmatpush.msra.mxu0 %v1886
        %2076 = vmatpush.msra.mxu0 %v1878
        %2077 = vmatpush.msra.mxu0 %v1870
        %2078 = vmatpush.msra.mxu0 %v1862
        %2079 = vmatpush.msra.mxu0 %v1854
        %2080 = vmatpush.msra.mxu0 %v1846
        %2081 = vmatpush.msra.mxu0 %v1838
        %2082 = vmatmul.f32.gmra.mxu0 %v1965
        %v2083 = vpop.f32.mrf.mxu0
        %v2084 = vadd.f32 %v2064, %v2083
        %2085 = vdwg.mxu0
        %2086 = vmatpush.msra.mxu0 %v1831
        %2087 = vmatpush.msra.mxu0 %v1823
        %2088 = vmatpush.msra.mxu0 %v1815
        %2089 = vmatpush.msra.mxu0 %v1807
        %2090 = vmatpush.msra.mxu0 %v1799
        %2091 = vmatpush.msra.mxu0 %v1791
        %2092 = vmatpush.msra.mxu0 %v1783
        %2093 = vmatpush.msra.mxu0 %v1775
        %2094 = vmatpush.msra.mxu0 %v1767
        %2095 = vmatpush.msra.mxu0 %v1759
        %2096 = vmatpush.msra.mxu0 %v1751
        %2097 = vmatpush.msra.mxu0 %v1743
        %2098 = vmatpush.msra.mxu0 %v1735
        %2099 = vmatpush.msra.mxu0 %v1727
        %2100 = vmatpush.msra.mxu0 %v1719
        %2101 = vmatpush.msra.mxu0 %v1711
        %2102 = vmatmul.f32.gmra.mxu0 %v1964
        %v2103 = vpop.f32.mrf.mxu0
        %v2104 = vadd.f32 0.0, %v2103
        %2105 = vdwg.mxu0
        %2106 = vmatpush.msra.mxu0 %v1959
        %2107 = vmatpush.msra.mxu0 %v1951
        %2108 = vmatpush.msra.mxu0 %v1943
        %2109 = vmatpush.msra.mxu0 %v1935
        %2110 = vmatpush.msra.mxu0 %v1927
        %2111 = vmatpush.msra.mxu0 %v1919
        %2112 = vmatpush.msra.mxu0 %v1911
        %2113 = vmatpush.msra.mxu0 %v1903
        %2114 = vmatpush.msra.mxu0 %v1895
        %2115 = vmatpush.msra.mxu0 %v1887
        %2116 = vmatpush.msra.mxu0 %v1879
        %2117 = vmatpush.msra.mxu0 %v1871
        %2118 = vmatpush.msra.mxu0 %v1863
        %2119 = vmatpush.msra.mxu0 %v1855
        %2120 = vmatpush.msra.mxu0 %v1847
        %2121 = vmatpush.msra.mxu0 %v1839
        %2122 = vmatmul.f32.gmra.mxu0 %v1965
        %v2123 = vpop.f32.mrf.mxu0
        %v2124 = vadd.f32 %v2104, %v2123
        %2125 = vdwg.mxu0
        %2126 = vmatpush.msra.mxu0 %v1832
        %2127 = vmatpush.msra.mxu0 %v1824
        %2128 = vmatpush.msra.mxu0 %v1816
        %2129 = vmatpush.msra.mxu0 %v1808
        %2130 = vmatpush.msra.mxu0 %v1800
        %2131 = vmatpush.msra.mxu0 %v1792
        %2132 = vmatpush.msra.mxu0 %v1784
        %2133 = vmatpush.msra.mxu0 %v1776
        %2134 = vmatpush.msra.mxu0 %v1768
        %2135 = vmatpush.msra.mxu0 %v1760
        %2136 = vmatpush.msra.mxu0 %v1752
        %2137 = vmatpush.msra.mxu0 %v1744
        %2138 = vmatpush.msra.mxu0 %v1736
        %2139 = vmatpush.msra.mxu0 %v1728
        %2140 = vmatpush.msra.mxu0 %v1720
        %2141 = vmatpush.msra.mxu0 %v1712
        %2142 = vmatmul.f32.gmra.mxu0 %v1964
        %v2143 = vpop.f32.mrf.mxu0
        %v2144 = vadd.f32 0.0, %v2143
        %2145 = vdwg.mxu0
        %2146 = vmatpush.msra.mxu0 %v1960
        %2147 = vmatpush.msra.mxu0 %v1952
        %2148 = vmatpush.msra.mxu0 %v1944
        %2149 = vmatpush.msra.mxu0 %v1936
        %2150 = vmatpush.msra.mxu0 %v1928
        %2151 = vmatpush.msra.mxu0 %v1920
        %2152 = vmatpush.msra.mxu0 %v1912
        %2153 = vmatpush.msra.mxu0 %v1904
        %2154 = vmatpush.msra.mxu0 %v1896
        %2155 = vmatpush.msra.mxu0 %v1888
        %2156 = vmatpush.msra.mxu0 %v1880
        %2157 = vmatpush.msra.mxu0 %v1872
        %2158 = vmatpush.msra.mxu0 %v1864
        %2159 = vmatpush.msra.mxu0 %v1856
        %2160 = vmatpush.msra.mxu0 %v1848
        %2161 = vmatpush.msra.mxu0 %v1840
        %2162 = vmatmul.f32.gmra.mxu0 %v1965
        %v2163 = vpop.f32.mrf.mxu0
        %v2164 = vadd.f32 %v2144, %v2163
        %2165 = vdwg.mxu0
        %2166 = vmatpush.msra.mxu0 %v1833
        %2167 = vmatpush.msra.mxu0 %v1825
        %2168 = vmatpush.msra.mxu0 %v1817
        %2169 = vmatpush.msra.mxu0 %v1809
        %2170 = vmatpush.msra.mxu0 %v1801
        %2171 = vmatpush.msra.mxu0 %v1793
        %2172 = vmatpush.msra.mxu0 %v1785
        %2173 = vmatpush.msra.mxu0 %v1777
        %2174 = vmatpush.msra.mxu0 %v1769
        %2175 = vmatpush.msra.mxu0 %v1761
        %2176 = vmatpush.msra.mxu0 %v1753
        %2177 = vmatpush.msra.mxu0 %v1745
        %2178 = vmatpush.msra.mxu0 %v1737
        %2179 = vmatpush.msra.mxu0 %v1729
        %2180 = vmatpush.msra.mxu0 %v1721
        %2181 = vmatpush.msra.mxu0 %v1713
        %2182 = vmatmul.f32.gmra.mxu0 %v1964
        %v2183 = vpop.f32.mrf.mxu0
        %v2184 = vadd.f32 0.0, %v2183
        %2185 = vdwg.mxu0
        %2186 = vmatpush.msra.mxu0 %v1961
        %2187 = vmatpush.msra.mxu0 %v1953
        %2188 = vmatpush.msra.mxu0 %v1945
        %2189 = vmatpush.msra.mxu0 %v1937
        %2190 = vmatpush.msra.mxu0 %v1929
        %2191 = vmatpush.msra.mxu0 %v1921
        %2192 = vmatpush.msra.mxu0 %v1913
        %2193 = vmatpush.msra.mxu0 %v1905
        %2194 = vmatpush.msra.mxu0 %v1897
        %2195 = vmatpush.msra.mxu0 %v1889
        %2196 = vmatpush.msra.mxu0 %v1881
        %2197 = vmatpush.msra.mxu0 %v1873
        %2198 = vmatpush.msra.mxu0 %v1865
        %2199 = vmatpush.msra.mxu0 %v1857
        %2200 = vmatpush.msra.mxu0 %v1849
        %2201 = vmatpush.msra.mxu0 %v1841
        %2202 = vmatmul.f32.gmra.mxu0 %v1965
        %v2203 = vpop.f32.mrf.mxu0
        %v2204 = vadd.f32 %v2184, %v2203
        %2205 = vdwg.mxu0
        %2206 = vmatpush.msra.mxu0 %v1834
        %2207 = vmatpush.msra.mxu0 %v1826
        %2208 = vmatpush.msra.mxu0 %v1818
        %2209 = vmatpush.msra.mxu0 %v1810
        %2210 = vmatpush.msra.mxu0 %v1802
        %2211 = vmatpush.msra.mxu0 %v1794
        %2212 = vmatpush.msra.mxu0 %v1786
        %2213 = vmatpush.msra.mxu0 %v1778
        %2214 = vmatpush.msra.mxu0 %v1770
        %2215 = vmatpush.msra.mxu0 %v1762
        %2216 = vmatpush.msra.mxu0 %v1754
        %2217 = vmatpush.msra.mxu0 %v1746
        %2218 = vmatpush.msra.mxu0 %v1738
        %2219 = vmatpush.msra.mxu0 %v1730
        %2220 = vmatpush.msra.mxu0 %v1722
        %2221 = vmatpush.msra.mxu0 %v1714
        %2222 = vmatmul.f32.gmra.mxu0 %v1964
        %v2223 = vpop.f32.mrf.mxu0
        %v2224 = vadd.f32 0.0, %v2223
        %2225 = vdwg.mxu0
        %2226 = vmatpush.msra.mxu0 %v1962
        %2227 = vmatpush.msra.mxu0 %v1954
        %2228 = vmatpush.msra.mxu0 %v1946
        %2229 = vmatpush.msra.mxu0 %v1938
        %2230 = vmatpush.msra.mxu0 %v1930
        %2231 = vmatpush.msra.mxu0 %v1922
        %2232 = vmatpush.msra.mxu0 %v1914
        %2233 = vmatpush.msra.mxu0 %v1906
        %2234 = vmatpush.msra.mxu0 %v1898
        %2235 = vmatpush.msra.mxu0 %v1890
        %2236 = vmatpush.msra.mxu0 %v1882
        %2237 = vmatpush.msra.mxu0 %v1874
        %2238 = vmatpush.msra.mxu0 %v1866
        %2239 = vmatpush.msra.mxu0 %v1858
        %2240 = vmatpush.msra.mxu0 %v1850
        %2241 = vmatpush.msra.mxu0 %v1842
        %2242 = vmatmul.f32.gmra.mxu0 %v1965
        %v2243 = vpop.f32.mrf.mxu0
        %v2244 = vadd.f32 %v2224, %v2243
        %2245 = vdwg.mxu0
        %2246 = vmatpush.msra.mxu0 %v1835
        %2247 = vmatpush.msra.mxu0 %v1827
        %2248 = vmatpush.msra.mxu0 %v1819
        %2249 = vmatpush.msra.mxu0 %v1811
        %2250 = vmatpush.msra.mxu0 %v1803
        %2251 = vmatpush.msra.mxu0 %v1795
        %2252 = vmatpush.msra.mxu0 %v1787
        %2253 = vmatpush.msra.mxu0 %v1779
        %2254 = vmatpush.msra.mxu0 %v1771
        %2255 = vmatpush.msra.mxu0 %v1763
        %2256 = vmatpush.msra.mxu0 %v1755
        %2257 = vmatpush.msra.mxu0 %v1747
        %2258 = vmatpush.msra.mxu0 %v1739
        %2259 = vmatpush.msra.mxu0 %v1731
        %2260 = vmatpush.msra.mxu0 %v1723
        %2261 = vmatpush.msra.mxu0 %v1715
        %2262 = vmatmul.f32.gmra.mxu0 %v1964
        %v2263 = vpop.f32.mrf.mxu0
        %v2264 = vadd.f32 0.0, %v2263
        %2265 = vdwg.mxu0
        %2266 = vmatpush.msra.mxu0 %v1963
        %2267 = vmatpush.msra.mxu0 %v1955
        %2268 = vmatpush.msra.mxu0 %v1947
        %2269 = vmatpush.msra.mxu0 %v1939
        %2270 = vmatpush.msra.mxu0 %v1931
        %2271 = vmatpush.msra.mxu0 %v1923
        %2272 = vmatpush.msra.mxu0 %v1915
        %2273 = vmatpush.msra.mxu0 %v1907
        %2274 = vmatpush.msra.mxu0 %v1899
        %2275 = vmatpush.msra.mxu0 %v1891
        %2276 = vmatpush.msra.mxu0 %v1883
        %2277 = vmatpush.msra.mxu0 %v1875
        %2278 = vmatpush.msra.mxu0 %v1867
        %2279 = vmatpush.msra.mxu0 %v1859
        %2280 = vmatpush.msra.mxu0 %v1851
        %2281 = vmatpush.msra.mxu0 %v1843
        %2282 = vmatmul.f32.gmra.mxu0 %v1965
        %v2283 = vpop.f32.mrf.mxu0
        %v2284 = vadd.f32 %v2264, %v2283
        %2285 = vdwg.mxu0
        %s2286 = sld [smem:[#allocation2]]
        %v2287 = vstv %s2286
        %v2288 = vadd.f32 %v2004, %v2287
        %v2289 = vadd.f32 %v2044, %v2287
        %v2290 = vadd.f32 %v2084, %v2287
        %v2291 = vadd.f32 %v2124, %v2287
        %v2292 = vadd.f32 %v2164, %v2287
        %v2293 = vadd.f32 %v2204, %v2287
        %v2294 = vadd.f32 %v2244, %v2287
        %v2295 = vadd.f32 %v2284, %v2287
        %v2304 = vrot.slane %v2289, 7
        %v2305 = vrot.slane %v2290, 6
        %v2306 = vrot.slane %v2291, 5
        %v2307 = vrot.slane %v2292, 4
        %v2308 = vrot.slane %v2293, 3
        %v2309 = vrot.slane %v2294, 2
        %v2310 = vrot.slane %v2295, 1
        %vm2311 = vcmask 1040384
        %v2312 = vsel %vm2311, %v2288, %v2304
        %vm2313 = vcmask 1042434
        %v2314 = vsel %vm2313, %v2305, %v2306
        %vm2315 = vcmask 1041408
        %v2316 = vsel %vm2315, %v2312, %v2314
        %vm2317 = vcmask 1044484
        %v2318 = vsel %vm2317, %v2307, %v2308
        %vm2319 = vcmask 1046534
        %v2320 = vsel %vm2319, %v2309, %v2310
        %vm2321 = vcmask 1045508
        %v2322 = vsel %vm2321, %v2318, %v2320
        %vm2323 = vcmask 1043456
        %v2324 = vsel %vm2323, %v2316, %v2322
        %2326 = vst [vmem:[%s192] sm:$0xff] %v2324
        %s2327 = sand.u32 %s116, 1
        %s2328 = scalar_lea.sflag [#allocation4], %s2327
        %s2329 = sand.u32 %s116, 1
        %s2330 = smul.addr %s2329, 8
        %s2331 = scalar_lea.vmem [#allocation3], %s2330
        // Predicated region
        $region37: #{tpu_custom_call.1} parent=35 // pred_check
          %p2332 = pneg %p126
        $region38: #{tpu_custom_call.1} parent=35 // pred_check_branch
          %2334 = sbr.rel (%p2332) target = $region40
        $region39: #{tpu_custom_call.1} parent=35 // pred_region
          %2336 = vsyncadd %s2328, 0
          %s2337 = smul.addr %s19, 8
          %s2338 = scalar_lea.hbm %s4, %s2337
          %s2340 = sshll.u32 %s2331, 4
          %s2341 = int_to_ptr.vmem [resolvable:$true] %s2340
          %s2342 = sshll.u32 %s2338, 4
          %s2343 = int_to_ptr.hbm [resolvable:$true] %s2342
          %2345 = dma.vmem_to_hbm [thread:$0]  %s2341, 128, %s2343, %s2328
        $region40: #{tpu_custom_call.1} parent=35 // pred_fallthru
          _
      $region36: #{tpu_custom_call.1} parent=5 // pred_fallthru
        _
      %p2346 = scmp.le.s32.totalorder 2, %s14
      // Predicated region
      $region41: #{tpu_custom_call.1} parent=5 // pred_check
        %p2347 = pneg %p2346
      $region42: #{tpu_custom_call.1} parent=5 // pred_check_branch
        %2349 = sbr.rel (%p2347) target = $region44
      $region43: #{tpu_custom_call.1} parent=5 // pred_region
        %s2350 = ssub.s32 %s14, 2
        // Predicated region
        $region45: #{tpu_custom_call.1} parent=43 // pred_check
          %p2351 = pneg %p132
        $region46: #{tpu_custom_call.1} parent=43 // pred_check_branch
          %2353 = sbr.rel (%p2351) target = $region48
        $region47: #{tpu_custom_call.1} parent=43 // pred_region
          %s2354 = sand.u32 %s117, 1
          %s2355 = scalar_lea.sflag [#allocation4], %s2354
          %s2356 = sand.u32 %s117, 1
          %s2357 = smul.addr %s2356, 8
          %s2358 = scalar_lea.vmem [#allocation3], %s2357
          %2360 = dma.done %s2355, 128
        $region48: #{tpu_custom_call.1} parent=43 // pred_fallthru
          _
      $region44: #{tpu_custom_call.1} parent=5 // pred_fallthru
        _
    $region6: #{tpu_custom_call.1} parent=1 // loop_footer
      %s18 = sadd.s32 1, %s14
    $region7: #{tpu_custom_call.1} parent=1 // loop_footer_branch
      %13 = sbr.rel target = $region3
    $region8: #{tpu_custom_call.1} parent=1 // loop_exit
      _
    %2361 = vsyncpa [#allocation4], 1
    %s2362 = scalar_lea.sflag [#allocation4], 1
    %2363 = vsyncpa %s2362, 1

</llo_original>
